<compile_context>
chip_gen: v6e
topology: v6e:2x2x1
jax: 0.10.0
libtpu: 0.0.40
codegen_flags: <defaults>
</compile_context>

<pallas_src>
import functools

import jax
import jax.numpy as jnp
from jax.experimental import pallas as pl
from jax.experimental.pallas import tpu as pltpu


def _bilinear_matrix(in_size, out_size, dtype=jnp.float32):
    """Interpolation matrix M (out_size, in_size) so that out = M @ in.

    Matches PyTorch nn.Upsample(mode='bilinear', align_corners=False):
      src = (dst + 0.5) * (in/out) - 0.5, clamped at 0; linear weights between
      floor(src) and floor(src)+1 (clamped to in_size-1).
    """
    scale = in_size / out_size
    dst = jnp.arange(out_size, dtype=jnp.float32)
    src = jnp.maximum((dst + 0.5) * scale - 0.5, 0.0)
    i0 = jnp.minimum(jnp.floor(src).astype(jnp.int32), in_size - 1)
    i1 = jnp.minimum(i0 + 1, in_size - 1)
    w1 = src - i0.astype(jnp.float32)
    w0 = 1.0 - w1
    cols = jnp.arange(in_size, dtype=jnp.int32)[None, :]
    m = (w0[:, None] * (cols == i0[:, None]).astype(jnp.float32)
         + w1[:, None] * (cols == i1[:, None]).astype(jnp.float32))
    return m.astype(dtype)


def _dsv_kernel(x_ref, w_ref, b_ref, ry_ref, rxt_ref, o_ref):
    # x_ref  : (Nb, C_in, H, W)            compute dtype
    # w_ref  : (C_out, C_in)               compute dtype
    # b_ref  : (C_out, 1)                  f32
    # ry_ref : (H_out, H)                  compute dtype
    # rxt_ref: (W, W_out)                  compute dtype (rx pre-transposed in wrapper)
    # o_ref  : (Nb, C_out, H_out, W_out)   output dtype
    nb_blk = x_ref.shape[0]
    c_out = w_ref.shape[0]

    w = w_ref[...]
    b = b_ref[...]
    ry = ry_ref[...]
    rxt = rxt_ref[...]

    # Nb and C_out are small -> unrolled Python loops (per perf review).
    for nb in range(nb_blk):
        x = x_ref[nb]                                              # (C_in, H, W)
        # 1x1 conv == channel contraction on the MXU, f32 accumulation.
        y = jax.lax.dot_general(w, x, (((1,), (0,)), ((), ())),
                                preferred_element_type=jnp.float32)  # (C_out, H, W)
        for c in range(c_out):
            yc = (y[c] + b[c]).astype(rxt.dtype)                   # (H, W), bias folded in
            # Separable bilinear upsample: columns then rows, two 2-D MXU matmuls.
            t = jnp.dot(yc, rxt, preferred_element_type=jnp.float32)         # (H, W_out)
            oc = jnp.dot(ry, t.astype(ry.dtype),
                         preferred_element_type=jnp.float32)                 # (H_out, W_out)
            o_ref[nb, c] = oc.astype(o_ref.dtype)                  # direct store, no transpose


@functools.partial(jax.jit,
                   static_argnames=("scale_factor", "compute_dtype", "batch_block"))
def unet_dsv2(x, weight, bias, scale_factor,
              compute_dtype=jnp.float32, batch_block=None):
    """x: (N, C_in, H, W); weight: (C_out, C_in); bias: (C_out,)."""
    n, c_in, h, w = x.shape
    c_out = weight.shape[0]
    h_out, w_out = h * scale_factor, w * scale_factor

    cd = jnp.dtype(compute_dtype)
    out_dtype = x.dtype
    in_bytes = cd.itemsize
    out_bytes = jnp.dtype(out_dtype).itemsize

    # Interpolation matrices (built in f32, cast to the MXU compute dtype).
    ry = _bilinear_matrix(h, h_out).astype(cd)        # (H_out, H)
    rxt = _bilinear_matrix(w, w_out).astype(cd).T     # (W, W_out)

    # Batch block: as many images per grid step as comfortably fit VMEM.
    per_image = c_in * h * w * in_bytes + c_out * h_out * w_out * out_bytes
    if batch_block is None:
        batch_block = max(1, min(n, (6 * 1024 * 1024) // max(per_image, 1)))
    nb = int(batch_block)
    grid = (pl.cdiv(n, nb),)

    const_bytes = (c_out * c_in + h_out * h + w * w_out) * in_bytes + c_out * 4
    step_bytes = nb * per_image + const_bytes
    vmem_limit = int(min(60 * 1024 * 1024, max(32 * 1024 * 1024, 4 * step_bytes)))

    flops = 2 * n * c_out * (c_in * h * w + h * w * w_out + h_out * h * w_out)
    bytes_accessed = n * per_image + const_bytes

    return pl.pallas_call(
        _dsv_kernel,
        out_shape=jax.ShapeDtypeStruct((n, c_out, h_out, w_out), out_dtype),
        grid_spec=pltpu.PrefetchScalarGridSpec(
            num_scalar_prefetch=0,
            grid=grid,
            in_specs=[
                pl.BlockSpec((nb, c_in, h, w), lambda i: (i, 0, 0, 0)),
                pl.BlockSpec((c_out, c_in), lambda i: (0, 0)),
                pl.BlockSpec((c_out, 1), lambda i: (0, 0)),
                pl.BlockSpec((h_out, h), lambda i: (0, 0)),
                pl.BlockSpec((w, w_out), lambda i: (0, 0)),
            ],
            out_specs=pl.BlockSpec((nb, c_out, h_out, w_out),
                                   lambda i: (i, 0, 0, 0)),
        ),
        compiler_params=pltpu.CompilerParams(
            dimension_semantics=("parallel",),
            vmem_limit_bytes=vmem_limit),
        cost_estimate=pl.CostEstimate(
            flops=flops, transcendentals=0, bytes_accessed=bytes_accessed),
    )(x.astype(cd), weight.astype(cd),
      bias.reshape(c_out, 1).astype(jnp.float32), ry, rxt)


def _reference(x, weight, bias, scale_factor):
    """Plain-JAX reference (same math): 1x1 conv + bilinear upsample.

    Note: matrix construction follows PyTorch's align_corners=False source-index
    formula; this check validates the kernel against the JAX reference.
    """
    n, c_in, h, w = x.shape
    h_out, w_out = h * scale_factor, w * scale_factor
    y = jnp.einsum("oc,nchw->nohw", weight, x) + bias[None, :, None, None]
    ry = _bilinear_matrix(h, h_out, x.dtype)
    rx = _bilinear_matrix(w, w_out, x.dtype)
    t = jnp.einsum("ph,nchw->ncpw", ry, y)
    return jnp.einsum("qw,ncpw->ncpq", rx, t)


if __name__ == "__main__":
    # Module config (small, synthetic): UnetDsv2(in_size=4, out_size=2, scale_factor=2)
    in_size, out_size, scale_factor = 4, 2, 2
    N, H, W = 2, 16, 16

    key = jax.random.PRNGKey(0)
    kx, kw, kb = jax.random.split(key, 3)
    x = jax.random.normal(kx, (N, in_size, H, W), dtype=jnp.float32)
    # Conv2d 1x1 params: weight (out, in, 1, 1) -> (out, in)
    fan_in = float(in_size)  # kernel_size = 1
    bound = 1.0 / (fan_in ** 0.5)
    weight = jax.random.uniform(kw, (out_size, in_size), jnp.float32, -bound, bound)
    bias = jax.random.uniform(kb, (out_size,), jnp.float32, -bound, bound)

    ref = _reference(x, weight, bias, scale_factor)

    # f32 path (strict tolerance).
    out = jax.block_until_ready(unet_dsv2(x, weight, bias, scale_factor))
    assert out.shape == (N, out_size, H * scale_factor, W * scale_factor)
    assert jnp.allclose(out, ref, atol=1e-5, rtol=1e-5)

    # bf16 compute path (v6e/v7x roofline: halves MXU-operand bytes), f32 accumulation.
    out_bf16 = jax.block_until_ready(
        unet_dsv2(x, weight, bias, scale_factor, compute_dtype=jnp.bfloat16))
    assert out_bf16.shape == ref.shape
    assert jnp.allclose(out_bf16.astype(jnp.float32), ref, atol=1.5e-1, rtol=5e-2)

    print("KERNEL_OK")
</pallas_src>

<mosaic_0001>
module attributes {stable_mosaic.version = 11 : i64} {
  func.func @_dsv_kernel(%arg0: i32, %arg1: memref<2x4x16x16xf32, #tpu.memory_space<vmem>>, %arg2: memref<2x4xf32, #tpu.memory_space<vmem>>, %arg3: memref<2x1xf32, #tpu.memory_space<vmem>>, %arg4: memref<32x16xf32, #tpu.memory_space<vmem>>, %arg5: memref<16x32xf32, #tpu.memory_space<vmem>>, %arg6: memref<2x2x32x32xf32, #tpu.memory_space<vmem>>) attributes {dimension_semantics = [#tpu.dimension_semantics<parallel>], iteration_bounds = array<i64: 1>, scalar_prefetch = 0 : i64, scratch_operands = 0 : i64, tpu.core_type = #tpu.core_type<tc>, window_params = [{transform_indices = @transform_0, window_bounds = array<i64: 2, 4, 16, 16>}, {pipeline_mode = #tpu.pipeline_mode<synchronous>, transform_indices = @transform_1, window_bounds = array<i64: 2, 4>}, {pipeline_mode = #tpu.pipeline_mode<synchronous>, transform_indices = @transform_2, window_bounds = array<i64: 2, 1>}, {pipeline_mode = #tpu.pipeline_mode<synchronous>, transform_indices = @transform_3, window_bounds = array<i64: 32, 16>}, {pipeline_mode = #tpu.pipeline_mode<synchronous>, transform_indices = @transform_4, window_bounds = array<i64: 16, 32>}, {transform_indices = @transform_5, window_bounds = array<i64: 2, 2, 32, 32>}]} {
    %c0 = arith.constant 0 : index
    %c0_0 = arith.constant 0 : index
    %0 = vector.load %arg2[%c0, %c0_0] : memref<2x4xf32, #tpu.memory_space<vmem>>, vector<2x4xf32>
    %c0_1 = arith.constant 0 : index
    %c0_2 = arith.constant 0 : index
    %1 = vector.load %arg3[%c0_1, %c0_2] : memref<2x1xf32, #tpu.memory_space<vmem>>, vector<2x1xf32>
    %c0_3 = arith.constant 0 : index
    %c0_4 = arith.constant 0 : index
    %2 = vector.load %arg4[%c0_3, %c0_4] : memref<32x16xf32, #tpu.memory_space<vmem>>, vector<32x16xf32>
    %c0_5 = arith.constant 0 : index
    %c0_6 = arith.constant 0 : index
    %3 = vector.load %arg5[%c0_5, %c0_6] : memref<16x32xf32, #tpu.memory_space<vmem>>, vector<16x32xf32>
    %c0_7 = arith.constant 0 : index
    %c0_8 = arith.constant 0 : index
    %c0_9 = arith.constant 0 : index
    %c0_10 = arith.constant 0 : index
    %4 = vector.load %arg1[%c0_7, %c0_8, %c0_9, %c0_10] : memref<2x4x16x16xf32, #tpu.memory_space<vmem>>, vector<1x4x16x16xf32>
    %5 = vector.shape_cast %4 : vector<1x4x16x16xf32> to vector<4x16x16xf32>
    %cst = arith.constant dense<0.000000e+00> : vector<2x16x16xf32>
    %6 = tpu.matmul %0, %5, %cst {dimension_numbers = #tpu.dot_dimension_numbers<[1], [0], [0], [1, 2], [0, 0, 1, 1, 1, 2], [], []>} : vector<2x4xf32>, vector<4x16x16xf32>, vector<2x16x16xf32> -> vector<2x16x16xf32>
    %7 = vector.extract_strided_slice %6 {offsets = [0, 0, 0], sizes = [1, 16, 16], strides = [1, 1, 1]} : vector<2x16x16xf32> to vector<1x16x16xf32>
    %8 = vector.shape_cast %7 : vector<1x16x16xf32> to vector<16x16xf32>
    %9 = vector.extract_strided_slice %1 {offsets = [0, 0], sizes = [1, 1], strides = [1, 1]} : vector<2x1xf32> to vector<1x1xf32>
    %10 = vector.shape_cast %9 : vector<1x1xf32> to vector<1xf32>
    %11 = vector.shape_cast %10 : vector<1xf32> to vector<1x1xf32>
    %12 = vector.broadcast %11 : vector<1x1xf32> to vector<16x16xf32>
    %13 = arith.addf %8, %12 : vector<16x16xf32>
    %cst_11 = arith.constant dense<0.000000e+00> : vector<16x32xf32>
    %14 = tpu.matmul %13, %3, %cst_11 {dimension_numbers = #tpu.dot_dimension_numbers<[1], [0], [0], [1], [0, 0, 1, 1], [], []>} : vector<16x16xf32>, vector<16x32xf32>, vector<16x32xf32> -> vector<16x32xf32>
    %cst_12 = arith.constant dense<0.000000e+00> : vector<32x32xf32>
    %15 = tpu.matmul %2, %14, %cst_12 {dimension_numbers = #tpu.dot_dimension_numbers<[1], [0], [0], [1], [0, 0, 1, 1], [], []>} : vector<32x16xf32>, vector<16x32xf32>, vector<32x32xf32> -> vector<32x32xf32>
    %c0_13 = arith.constant 0 : index
    %c0_14 = arith.constant 0 : index
    %c0_15 = arith.constant 0 : index
    %c0_16 = arith.constant 0 : index
    %16 = vector.load %arg6[%c0_13, %c0_14, %c0_15, %c0_16] : memref<2x2x32x32xf32, #tpu.memory_space<vmem>>, vector<1x1x32x32xf32>
    %17 = vector.shape_cast %16 : vector<1x1x32x32xf32> to vector<32x32xf32>
    %18 = vector.shape_cast %15 : vector<32x32xf32> to vector<1x1x32x32xf32>
    tpu.vector_store %arg6[%c0_13, %c0_14, %c0_15, %c0_16], %18 {strides = array<i32>} : memref<2x2x32x32xf32, #tpu.memory_space<vmem>>, vector<1x1x32x32xf32>,
    %19 = vector.extract_strided_slice %6 {offsets = [1, 0, 0], sizes = [1, 16, 16], strides = [1, 1, 1]} : vector<2x16x16xf32> to vector<1x16x16xf32>
    %20 = vector.shape_cast %19 : vector<1x16x16xf32> to vector<16x16xf32>
    %21 = vector.extract_strided_slice %1 {offsets = [1, 0], sizes = [1, 1], strides = [1, 1]} : vector<2x1xf32> to vector<1x1xf32>
    %22 = vector.shape_cast %21 : vector<1x1xf32> to vector<1xf32>
    %23 = vector.shape_cast %22 : vector<1xf32> to vector<1x1xf32>
    %24 = vector.broadcast %23 : vector<1x1xf32> to vector<16x16xf32>
    %25 = arith.addf %20, %24 : vector<16x16xf32>
    %cst_17 = arith.constant dense<0.000000e+00> : vector<16x32xf32>
    %26 = tpu.matmul %25, %3, %cst_17 {dimension_numbers = #tpu.dot_dimension_numbers<[1], [0], [0], [1], [0, 0, 1, 1], [], []>} : vector<16x16xf32>, vector<16x32xf32>, vector<16x32xf32> -> vector<16x32xf32>
    %cst_18 = arith.constant dense<0.000000e+00> : vector<32x32xf32>
    %27 = tpu.matmul %2, %26, %cst_18 {dimension_numbers = #tpu.dot_dimension_numbers<[1], [0], [0], [1], [0, 0, 1, 1], [], []>} : vector<32x16xf32>, vector<16x32xf32>, vector<32x32xf32> -> vector<32x32xf32>
    %c0_19 = arith.constant 0 : index
    %c1 = arith.constant 1 : index
    %c0_20 = arith.constant 0 : index
    %c0_21 = arith.constant 0 : index
    %28 = vector.load %arg6[%c0_19, %c1, %c0_20, %c0_21] : memref<2x2x32x32xf32, #tpu.memory_space<vmem>>, vector<1x1x32x32xf32>
    %29 = vector.shape_cast %28 : vector<1x1x32x32xf32> to vector<32x32xf32>
    %30 = vector.shape_cast %27 : vector<32x32xf32> to vector<1x1x32x32xf32>
    tpu.vector_store %arg6[%c0_19, %c1, %c0_20, %c0_21], %30 {strides = array<i32>} : memref<2x2x32x32xf32, #tpu.memory_space<vmem>>, vector<1x1x32x32xf32>,
    %c1_22 = arith.constant 1 : index
    %c0_23 = arith.constant 0 : index
    %c0_24 = arith.constant 0 : index
    %c0_25 = arith.constant 0 : index
    %31 = vector.load %arg1[%c1_22, %c0_23, %c0_24, %c0_25] : memref<2x4x16x16xf32, #tpu.memory_space<vmem>>, vector<1x4x16x16xf32>
    %32 = vector.shape_cast %31 : vector<1x4x16x16xf32> to vector<4x16x16xf32>
    %cst_26 = arith.constant dense<0.000000e+00> : vector<2x16x16xf32>
    %33 = tpu.matmul %0, %32, %cst_26 {dimension_numbers = #tpu.dot_dimension_numbers<[1], [0], [0], [1, 2], [0, 0, 1, 1, 1, 2], [], []>} : vector<2x4xf32>, vector<4x16x16xf32>, vector<2x16x16xf32> -> vector<2x16x16xf32>
    %34 = vector.extract_strided_slice %33 {offsets = [0, 0, 0], sizes = [1, 16, 16], strides = [1, 1, 1]} : vector<2x16x16xf32> to vector<1x16x16xf32>
    %35 = vector.shape_cast %34 : vector<1x16x16xf32> to vector<16x16xf32>
    %36 = vector.extract_strided_slice %1 {offsets = [0, 0], sizes = [1, 1], strides = [1, 1]} : vector<2x1xf32> to vector<1x1xf32>
    %37 = vector.shape_cast %36 : vector<1x1xf32> to vector<1xf32>
    %38 = vector.shape_cast %37 : vector<1xf32> to vector<1x1xf32>
    %39 = vector.broadcast %38 : vector<1x1xf32> to vector<16x16xf32>
    %40 = arith.addf %35, %39 : vector<16x16xf32>
    %cst_27 = arith.constant dense<0.000000e+00> : vector<16x32xf32>
    %41 = tpu.matmul %40, %3, %cst_27 {dimension_numbers = #tpu.dot_dimension_numbers<[1], [0], [0], [1], [0, 0, 1, 1], [], []>} : vector<16x16xf32>, vector<16x32xf32>, vector<16x32xf32> -> vector<16x32xf32>
    %cst_28 = arith.constant dense<0.000000e+00> : vector<32x32xf32>
    %42 = tpu.matmul %2, %41, %cst_28 {dimension_numbers = #tpu.dot_dimension_numbers<[1], [0], [0], [1], [0, 0, 1, 1], [], []>} : vector<32x16xf32>, vector<16x32xf32>, vector<32x32xf32> -> vector<32x32xf32>
    %c1_29 = arith.constant 1 : index
    %c0_30 = arith.constant 0 : index
    %c0_31 = arith.constant 0 : index
    %c0_32 = arith.constant 0 : index
    %43 = vector.load %arg6[%c1_29, %c0_30, %c0_31, %c0_32] : memref<2x2x32x32xf32, #tpu.memory_space<vmem>>, vector<1x1x32x32xf32>
    %44 = vector.shape_cast %43 : vector<1x1x32x32xf32> to vector<32x32xf32>
    %45 = vector.shape_cast %42 : vector<32x32xf32> to vector<1x1x32x32xf32>
    tpu.vector_store %arg6[%c1_29, %c0_30, %c0_31, %c0_32], %45 {strides = array<i32>} : memref<2x2x32x32xf32, #tpu.memory_space<vmem>>, vector<1x1x32x32xf32>,
    %46 = vector.extract_strided_slice %33 {offsets = [1, 0, 0], sizes = [1, 16, 16], strides = [1, 1, 1]} : vector<2x16x16xf32> to vector<1x16x16xf32>
    %47 = vector.shape_cast %46 : vector<1x16x16xf32> to vector<16x16xf32>
    %48 = vector.extract_strided_slice %1 {offsets = [1, 0], sizes = [1, 1], strides = [1, 1]} : vector<2x1xf32> to vector<1x1xf32>
    %49 = vector.shape_cast %48 : vector<1x1xf32> to vector<1xf32>
    %50 = vector.shape_cast %49 : vector<1xf32> to vector<1x1xf32>
    %51 = vector.broadcast %50 : vector<1x1xf32> to vector<16x16xf32>
    %52 = arith.addf %47, %51 : vector<16x16xf32>
    %cst_33 = arith.constant dense<0.000000e+00> : vector<16x32xf32>
    %53 = tpu.matmul %52, %3, %cst_33 {dimension_numbers = #tpu.dot_dimension_numbers<[1], [0], [0], [1], [0, 0, 1, 1], [], []>} : vector<16x16xf32>, vector<16x32xf32>, vector<16x32xf32> -> vector<16x32xf32>
    %cst_34 = arith.constant dense<0.000000e+00> : vector<32x32xf32>
    %54 = tpu.matmul %2, %53, %cst_34 {dimension_numbers = #tpu.dot_dimension_numbers<[1], [0], [0], [1], [0, 0, 1, 1], [], []>} : vector<32x16xf32>, vector<16x32xf32>, vector<32x32xf32> -> vector<32x32xf32>
    %c1_35 = arith.constant 1 : index
    %c1_36 = arith.constant 1 : index
    %c0_37 = arith.constant 0 : index
    %c0_38 = arith.constant 0 : index
    %55 = vector.load %arg6[%c1_35, %c1_36, %c0_37, %c0_38] : memref<2x2x32x32xf32, #tpu.memory_space<vmem>>, vector<1x1x32x32xf32>
    %56 = vector.shape_cast %55 : vector<1x1x32x32xf32> to vector<32x32xf32>
    %57 = vector.shape_cast %54 : vector<32x32xf32> to vector<1x1x32x32xf32>
    tpu.vector_store %arg6[%c1_35, %c1_36, %c0_37, %c0_38], %57 {strides = array<i32>} : memref<2x2x32x32xf32, #tpu.memory_space<vmem>>, vector<1x1x32x32xf32>,
    return
  }
  func.func @transform_0(%arg0: i32) -> (i32, i32, i32, i32) {
    %c0_i32 = arith.constant 0 : i32
    %c0_i32_0 = arith.constant 0 : i32
    %c0_i32_1 = arith.constant 0 : i32
    %c0_i32_2 = arith.constant 0 : i32
    return %arg0, %c0_i32, %c0_i32_0, %c0_i32_1 : i32, i32, i32, i32
  }
  func.func @transform_1(%arg0: i32) -> (i32, i32) {
    %c0_i32 = arith.constant 0 : i32
    %c0_i32_0 = arith.constant 0 : i32
    %c0_i32_1 = arith.constant 0 : i32
    return %c0_i32, %c0_i32_0 : i32, i32
  }
  func.func @transform_2(%arg0: i32) -> (i32, i32) {
    %c0_i32 = arith.constant 0 : i32
    %c0_i32_0 = arith.constant 0 : i32
    %c0_i32_1 = arith.constant 0 : i32
    return %c0_i32, %c0_i32_0 : i32, i32
  }
  func.func @transform_3(%arg0: i32) -> (i32, i32) {
    %c0_i32 = arith.constant 0 : i32
    %c0_i32_0 = arith.constant 0 : i32
    %c0_i32_1 = arith.constant 0 : i32
    return %c0_i32, %c0_i32_0 : i32, i32
  }
  func.func @transform_4(%arg0: i32) -> (i32, i32) {
    %c0_i32 = arith.constant 0 : i32
    %c0_i32_0 = arith.constant 0 : i32
    %c0_i32_1 = arith.constant 0 : i32
    return %c0_i32, %c0_i32_0 : i32, i32
  }
  func.func @transform_5(%arg0: i32) -> (i32, i32, i32, i32) {
    %c0_i32 = arith.constant 0 : i32
    %c0_i32_0 = arith.constant 0 : i32
    %c0_i32_1 = arith.constant 0 : i32
    %c0_i32_2 = arith.constant 0 : i32
    return %arg0, %c0_i32, %c0_i32_0, %c0_i32_1 : i32, i32, i32, i32
  }
}

</mosaic_0001>

<llo_original>
// kernel: unet_dsv2.1
$region0: #{unet_dsv2.1}
  #allocation0 [shape = 'u32[]', space=smem, size = 0x4, offset = 0x4, fixed_abs, tag = 'smem constant byte address 0x4 - core index']
  #allocation1 [shape = 'u32[144,128]{1,0:T(1,128)}', space=vmem, size = 0x12000, scoped, tag = 'internal scratch']
  %s0 = inlined_call_operand.hbm [shape: f32[2,4,16,16], index: 0, kind: input, shape index: {}]
  %s1 = inlined_call_operand.vmem [shape: f32[2,4], index: 1, kind: input, shape index: {}]
  %s2 = inlined_call_operand.vmem [shape: f32[2,1], index: 2, kind: input, shape index: {}]
  %s3 = inlined_call_operand.vmem [shape: f32[32,16], index: 3, kind: input, shape index: {}]
  %s4 = inlined_call_operand.vmem [shape: f32[16,32], index: 4, kind: input, shape index: {}]
  %s5 = inlined_call_operand.hbm [shape: f32[2,2,32,32], index: 5, kind: output, shape index: {}]
  %s6 = sld [smem:[#allocation0]]
  $region34: #{unet_dsv2.1} parent=0
    _
  %s8 = ssub.s32 1, %s6
  %s9 = scalar_select 0, %s8, %s6
  $region1: #{unet_dsv2.1} parent=0
    #allocation2 [shape = 'u8[65536]{0}', space=vmem, size = 0x10000, scoped, tag = 'input window, operand 0, single buffered']
    #allocation3 [shape = 's32[1]{0}', space=sflag, size = 0x4, scoped, tag = 'scoped memory for unet_dsv2.1']
    #allocation4 [shape = 's32[1]{0}', space=sflag, size = 0x4, scoped, tag = 'scoped memory for unet_dsv2.1']
    #allocation5 [shape = 'u8[65536]{0}', space=vmem, size = 0x10000, scoped, tag = 'output window, operand 0, single buffered']
    %10 = vsyncpa [#allocation3], 0
    %11 = vsyncpa [#allocation4], 0
    // Predicated region
    $region2: #{unet_dsv2.1} parent=1 // pred_check
      _
    $region3: #{unet_dsv2.1} parent=1 // pred_check_branch
      %13 = sbr.rel (0) target = $region5
    $region4: #{unet_dsv2.1} parent=1 // pred_region
      %s15 = ssub.s32 2048, 2048
      %16 = vsyncadd [#allocation3], %s15
      %s17 = sshll.u32 [#allocation2], 4
      %s18 = int_to_ptr.vmem [resolvable:$true] %s17
      %23 = dma.hbm_to_vmem [thread:$0]  %s0, 2048, %s18, [#allocation3], 128, 128, 8
    $region5: #{unet_dsv2.1} parent=1 // pred_fallthru
      _
    // Predicated region
    $region6: #{unet_dsv2.1} parent=1 // pred_check
      _
    $region7: #{unet_dsv2.1} parent=1 // pred_check_branch
      %25 = sbr.rel (0) target = $region9
    $region8: #{unet_dsv2.1} parent=1 // pred_region
      _
    $region9: #{unet_dsv2.1} parent=1 // pred_fallthru
      _
    // Predicated region
    $region10: #{unet_dsv2.1} parent=1 // pred_check
      _
    $region11: #{unet_dsv2.1} parent=1 // pred_check_branch
      %27 = sbr.rel (0) target = $region13
    $region12: #{unet_dsv2.1} parent=1 // pred_region
      _
    $region13: #{unet_dsv2.1} parent=1 // pred_fallthru
      _
    // Predicated region
    $region14: #{unet_dsv2.1} parent=1 // pred_check
      _
    $region15: #{unet_dsv2.1} parent=1 // pred_check_branch
      %29 = sbr.rel (0) target = $region17
    $region16: #{unet_dsv2.1} parent=1 // pred_region
      _
    $region17: #{unet_dsv2.1} parent=1 // pred_fallthru
      _
    // Predicated region
    $region18: #{unet_dsv2.1} parent=1 // pred_check
      _
    $region19: #{unet_dsv2.1} parent=1 // pred_check_branch
      %31 = sbr.rel (0) target = $region21
    $region20: #{unet_dsv2.1} parent=1 // pred_region
      _
    $region21: #{unet_dsv2.1} parent=1 // pred_fallthru
      _
    // Predicated region
    $region22: #{unet_dsv2.1} parent=1 // pred_check
      _
    $region23: #{unet_dsv2.1} parent=1 // pred_check_branch
      %33 = sbr.rel (0) target = $region25
    $region24: #{unet_dsv2.1} parent=1 // pred_region
      %34 = dma.done [#allocation3], 2048
    $region25: #{unet_dsv2.1} parent=1 // pred_fallthru
      _
    %v35 = vld [vmem:[%s1] sm:$0x3]
    %v36 = vld [vmem:[%s2] sm:$0x3]
    %v37 = vld [vmem:[%s3] sm:$0xff]
    %v38 = vld [vmem:[%s3 + $0x8] sm:$0xff]
    %v39 = vld [vmem:[%s3 + $0x10] sm:$0xff]
    %v40 = vld [vmem:[%s3 + $0x18] sm:$0xff]
    %v41 = vld [vmem:[%s4] sm:$0xff]
    %v42 = vld [vmem:[%s4 + $0x8] sm:$0xff]
    %v43 = vld [vmem:[#allocation2] sm:$0xff]
    %v44 = vld [vmem:[#allocation2 + $0x8] sm:$0xff]
    %v45 = vld [vmem:[#allocation2 + $0x10] sm:$0xff]
    %v46 = vld [vmem:[#allocation2 + $0x18] sm:$0xff]
    %v47 = vld [vmem:[#allocation2 + $0x20] sm:$0xff]
    %v48 = vld [vmem:[#allocation2 + $0x28] sm:$0xff]
    %v49 = vld [vmem:[#allocation2 + $0x30] sm:$0xff]
    %v50 = vld [vmem:[#allocation2 + $0x38] sm:$0xff]
    %v51 = vcombine.low %v43, %v47
    %v52 = vcombine.high %v43, %v47
    %v54 = vunpack.c.l.s4 1983009808
    %v55 = vunpack.c.0.s8 %v54
    %v56 = vlaneseq
    %v57 = vshrl.u32 %v56, 7
    %v58 = vsub.s32 %v55, %v57
    %v59 = vrot.slane %v51, %v58
    %v61 = vunpack.c.l.s4 1983009808
    %v62 = vunpack.c.0.s8 %v61
    %v63 = vlaneseq
    %v64 = vshrl.u32 %v63, 7
    %v65 = vsub.s32 %v62, %v64
    %v66 = vrot.slane %v52, %v65
    %v67 = vcombine.low %v45, %v49
    %v68 = vcombine.high %v45, %v49
    %v70 = vunpack.c.l.s4 1983009808
    %v71 = vunpack.c.0.s8 %v70
    %v72 = vlaneseq
    %v73 = vshrl.u32 %v72, 7
    %v74 = vsub.s32 %v71, %v73
    %v75 = vrot.slane %v67, %v74
    %v77 = vunpack.c.l.s4 1983009808
    %v78 = vunpack.c.0.s8 %v77
    %v79 = vlaneseq
    %v80 = vshrl.u32 %v79, 7
    %v81 = vsub.s32 %v78, %v80
    %v82 = vrot.slane %v68, %v81
    %v83 = vcombine.low %v59, %v75
    %v84 = vcombine.high %v59, %v75
    %v86 = vunpack.c.l.s4 1934713408
    %v87 = vunpack.c.0.s8 %v86
    %v88 = vlaneseq
    %v89 = vshrl.u32 %v88, 7
    %v90 = vsub.s32 %v87, %v89
    %v91 = vrot.slane %v83, %v90
    %v93 = vunpack.c.l.s4 1934713408
    %v94 = vunpack.c.0.s8 %v93
    %v95 = vlaneseq
    %v96 = vshrl.u32 %v95, 7
    %v97 = vsub.s32 %v94, %v96
    %v98 = vrot.slane %v84, %v97
    %v99 = vcombine.low %v66, %v82
    %v100 = vcombine.high %v66, %v82
    %v102 = vunpack.c.l.s4 1934713408
    %v103 = vunpack.c.0.s8 %v102
    %v104 = vlaneseq
    %v105 = vshrl.u32 %v104, 7
    %v106 = vsub.s32 %v103, %v105
    %v107 = vrot.slane %v99, %v106
    %v109 = vunpack.c.l.s4 1934713408
    %v110 = vunpack.c.0.s8 %v109
    %v111 = vlaneseq
    %v112 = vshrl.u32 %v111, 7
    %v113 = vsub.s32 %v110, %v112
    %v114 = vrot.slane %v100, %v113
    %v115 = vcombine.high %v91, 0.0
    %v116 = vcombine.high %v98, 0.0
    %v117 = vcombine.high %v107, 0.0
    %v118 = vcombine.high %v114, 0.0
    %v119 = vcombine.low %v44, %v48
    %v120 = vcombine.high %v44, %v48
    %v122 = vunpack.c.l.s4 1983009808
    %v123 = vunpack.c.0.s8 %v122
    %v124 = vlaneseq
    %v125 = vshrl.u32 %v124, 7
    %v126 = vsub.s32 %v123, %v125
    %v127 = vrot.slane %v119, %v126
    %v129 = vunpack.c.l.s4 1983009808
    %v130 = vunpack.c.0.s8 %v129
    %v131 = vlaneseq
    %v132 = vshrl.u32 %v131, 7
    %v133 = vsub.s32 %v130, %v132
    %v134 = vrot.slane %v120, %v133
    %v135 = vcombine.low %v46, %v50
    %v136 = vcombine.high %v46, %v50
    %v138 = vunpack.c.l.s4 1983009808
    %v139 = vunpack.c.0.s8 %v138
    %v140 = vlaneseq
    %v141 = vshrl.u32 %v140, 7
    %v142 = vsub.s32 %v139, %v141
    %v143 = vrot.slane %v135, %v142
    %v145 = vunpack.c.l.s4 1983009808
    %v146 = vunpack.c.0.s8 %v145
    %v147 = vlaneseq
    %v148 = vshrl.u32 %v147, 7
    %v149 = vsub.s32 %v146, %v148
    %v150 = vrot.slane %v136, %v149
    %v151 = vcombine.low %v127, %v143
    %v152 = vcombine.high %v127, %v143
    %v154 = vunpack.c.l.s4 1934713408
    %v155 = vunpack.c.0.s8 %v154
    %v156 = vlaneseq
    %v157 = vshrl.u32 %v156, 7
    %v158 = vsub.s32 %v155, %v157
    %v159 = vrot.slane %v151, %v158
    %v161 = vunpack.c.l.s4 1934713408
    %v162 = vunpack.c.0.s8 %v161
    %v163 = vlaneseq
    %v164 = vshrl.u32 %v163, 7
    %v165 = vsub.s32 %v162, %v164
    %v166 = vrot.slane %v152, %v165
    %v167 = vcombine.low %v134, %v150
    %v168 = vcombine.high %v134, %v150
    %v170 = vunpack.c.l.s4 1934713408
    %v171 = vunpack.c.0.s8 %v170
    %v172 = vlaneseq
    %v173 = vshrl.u32 %v172, 7
    %v174 = vsub.s32 %v171, %v173
    %v175 = vrot.slane %v167, %v174
    %v177 = vunpack.c.l.s4 1934713408
    %v178 = vunpack.c.0.s8 %v177
    %v179 = vlaneseq
    %v180 = vshrl.u32 %v179, 7
    %v181 = vsub.s32 %v178, %v180
    %v182 = vrot.slane %v168, %v181
    %v183 = vcombine.high %v159, 0.0
    %v184 = vcombine.high %v166, 0.0
    %v185 = vcombine.high %v175, 0.0
    %v186 = vcombine.high %v182, 0.0
    %188 = vrot.lane.b32.xlu0 %v115, 16
    %v189 = vpop.permute.xlu0 %188
    %192 = vrot.lane.b32.xlu0 %v98, 32
    %v193 = vpop.permute.xlu0 %192
    %196 = vrot.lane.b32.xlu0 %v116, 48
    %v197 = vpop.permute.xlu0 %196
    %200 = vrot.lane.b32.xlu0 %v107, 64
    %v201 = vpop.permute.xlu0 %200
    %204 = vrot.lane.b32.xlu0 %v117, 80
    %v205 = vpop.permute.xlu0 %204
    %208 = vrot.lane.b32.xlu0 %v114, 96
    %v209 = vpop.permute.xlu0 %208
    %212 = vrot.lane.b32.xlu0 %v118, 112
    %v213 = vpop.permute.xlu0 %212
    %216 = vrot.lane.b32.xlu0 %v183, 16
    %v217 = vpop.permute.xlu0 %216
    %220 = vrot.lane.b32.xlu0 %v166, 32
    %v221 = vpop.permute.xlu0 %220
    %224 = vrot.lane.b32.xlu0 %v184, 48
    %v225 = vpop.permute.xlu0 %224
    %228 = vrot.lane.b32.xlu0 %v175, 64
    %v229 = vpop.permute.xlu0 %228
    %232 = vrot.lane.b32.xlu0 %v185, 80
    %v233 = vpop.permute.xlu0 %232
    %236 = vrot.lane.b32.xlu0 %v182, 96
    %v237 = vpop.permute.xlu0 %236
    %240 = vrot.lane.b32.xlu0 %v186, 112
    %v241 = vpop.permute.xlu0 %240
    %vm243 = vcmask 130048
    %v244 = vsel %vm243, %v91, %v189
    %vm245 = vcmask 261120
    %v246 = vsel %vm245, %v244, %v193
    %vm247 = vcmask 392192
    %v248 = vsel %vm247, %v246, %v197
    %vm249 = vcmask 523264
    %v250 = vsel %vm249, %v248, %v201
    %vm251 = vcmask 654336
    %v252 = vsel %vm251, %v250, %v205
    %vm253 = vcmask 785408
    %v254 = vsel %vm253, %v252, %v209
    %vm255 = vcmask 916480
    %v256 = vsel %vm255, %v254, %v213
    %v257 = vsel %vm243, %v159, %v217
    %v258 = vsel %vm245, %v257, %v221
    %v259 = vsel %vm247, %v258, %v225
    %v260 = vsel %vm249, %v259, %v229
    %v261 = vsel %vm251, %v260, %v233
    %v262 = vsel %vm253, %v261, %v237
    %v263 = vsel %vm255, %v262, %v241
    %v264 = vcombine.high 0.0, 0.0
    %v266 = vunpack.c.l.s4 1983009808
    %v267 = vunpack.c.0.s8 %v266
    %v268 = vlaneseq
    %v269 = vshrl.u32 %v268, 7
    %v270 = vsub.s32 %v267, %v269
    %v272 = vunpack.c.l.s4 1983009808
    %v273 = vunpack.c.0.s8 %v272
    %v274 = vlaneseq
    %v275 = vshrl.u32 %v274, 7
    %v276 = vsub.s32 %v273, %v275
    %v277 = vrot.slane %v264, %v276
    %v278 = vcombine.low 0.0, 0.0
    %v279 = vcombine.high 0.0, 0.0
    %v281 = vunpack.c.l.s4 1934713408
    %v282 = vunpack.c.0.s8 %v281
    %v283 = vlaneseq
    %v284 = vshrl.u32 %v283, 7
    %v285 = vsub.s32 %v282, %v284
    %v286 = vrot.slane %v278, %v285
    %v288 = vunpack.c.l.s4 1934713408
    %v289 = vunpack.c.0.s8 %v288
    %v290 = vlaneseq
    %v291 = vshrl.u32 %v290, 7
    %v292 = vsub.s32 %v289, %v291
    %v293 = vrot.slane %v279, %v292
    %v294 = vcombine.low %v277, %v277
    %v295 = vcombine.high %v277, %v277
    %v297 = vunpack.c.l.s4 1934713408
    %v298 = vunpack.c.0.s8 %v297
    %v299 = vlaneseq
    %v300 = vshrl.u32 %v299, 7
    %v301 = vsub.s32 %v298, %v300
    %v302 = vrot.slane %v294, %v301
    %v304 = vunpack.c.l.s4 1934713408
    %v305 = vunpack.c.0.s8 %v304
    %v306 = vlaneseq
    %v307 = vshrl.u32 %v306, 7
    %v308 = vsub.s32 %v305, %v307
    %v309 = vrot.slane %v295, %v308
    %v310 = vcombine.high %v286, 0.0
    %v311 = vcombine.high %v293, 0.0
    %v312 = vcombine.high %v302, 0.0
    %v313 = vcombine.high %v309, 0.0
    %315 = vrot.lane.b32.xlu0 %v310, 16
    %v316 = vpop.permute.xlu0 %315
    %319 = vrot.lane.b32.xlu0 %v293, 32
    %v320 = vpop.permute.xlu0 %319
    %323 = vrot.lane.b32.xlu0 %v311, 48
    %v324 = vpop.permute.xlu0 %323
    %327 = vrot.lane.b32.xlu0 %v302, 64
    %v328 = vpop.permute.xlu0 %327
    %331 = vrot.lane.b32.xlu0 %v312, 80
    %v332 = vpop.permute.xlu0 %331
    %335 = vrot.lane.b32.xlu0 %v309, 96
    %v336 = vpop.permute.xlu0 %335
    %339 = vrot.lane.b32.xlu0 %v313, 112
    %v340 = vpop.permute.xlu0 %339
    %v342 = vsel %vm243, %v286, %v316
    %v343 = vsel %vm245, %v342, %v320
    %v344 = vsel %vm247, %v343, %v324
    %v345 = vsel %vm249, %v344, %v328
    %v346 = vsel %vm251, %v345, %v332
    %v347 = vsel %vm253, %v346, %v336
    %v348 = vsel %vm255, %v347, %v340
    %vm349 = vcmask 31744
    %v351 = vsel %vm349, %v35, 0
    %vm353 = vcmask 1043456
    %v355 = vsel %vm353, %v256, 0
    %v358 = vsel %vm353, %v263, 0
    %360 = vmatprep.subr.mxu0 0.0
    %361 = vmatpush1.msra.mxu0 0.0
    %362 = vmatprep.subr.mxu0 0.0
    %363 = vmatpush1.msra.mxu0 0.0
    %364 = vmatprep.subr.mxu0 0.0
    %365 = vmatpush1.msra.mxu0 0.0
    %366 = vmatprep.subr.mxu0 0.0
    %367 = vmatpush1.msra.mxu0 0.0
    %368 = vmatprep.subr.mxu0 0.0
    %369 = vmatpush1.msra.mxu0 0.0
    %370 = vmatprep.subr.mxu0 0.0
    %371 = vmatpush1.msra.mxu0 0.0
    %372 = vmatprep.subr.mxu0 0.0
    %373 = vmatpush1.msra.mxu0 0.0
    %374 = vmatprep.subr.mxu0 0.0
    %375 = vmatpush1.msra.mxu0 0.0
    %376 = vmatprep.subr.mxu0 0.0
    %377 = vmatpush1.msra.mxu0 0.0
    %378 = vmatprep.subr.mxu0 0.0
    %379 = vmatpush1.msra.mxu0 0.0
    %380 = vmatprep.subr.mxu0 0.0
    %381 = vmatpush1.msra.mxu0 0.0
    %382 = vmatprep.subr.mxu0 0.0
    %383 = vmatpush1.msra.mxu0 0.0
    %384 = vmatprep.subr.mxu0 0.0
    %385 = vmatpush1.msra.mxu0 0.0
    %386 = vmatprep.subr.mxu0 0.0
    %387 = vmatpush1.msra.mxu0 0.0
    %388 = vmatprep.subr.mxu0 0.0
    %389 = vmatpush1.msra.mxu0 0.0
    %390 = vmatprep.subr.mxu0 %v358
    %391 = vmatpush1.msra.mxu0 %v355
    %392 = vmatprep.subr.mxu0 0.0
    %393 = vmatpush2.msra.mxu0 0.0
    %394 = vmatprep.subr.mxu0 0.0
    %395 = vmatpush2.msra.mxu0 0.0
    %396 = vmatprep.subr.mxu0 0.0
    %397 = vmatpush2.msra.mxu0 0.0
    %398 = vmatprep.subr.mxu0 0.0
    %399 = vmatpush2.msra.mxu0 0.0
    %400 = vmatprep.subr.mxu0 0.0
    %401 = vmatpush2.msra.mxu0 0.0
    %402 = vmatprep.subr.mxu0 0.0
    %403 = vmatpush2.msra.mxu0 0.0
    %404 = vmatprep.subr.mxu0 0.0
    %405 = vmatpush2.msra.mxu0 0.0
    %406 = vmatprep.subr.mxu0 0.0
    %407 = vmatpush2.msra.mxu0 0.0
    %408 = vmatprep.subr.mxu0 0.0
    %409 = vmatpush2.msra.mxu0 0.0
    %410 = vmatprep.subr.mxu0 0.0
    %411 = vmatpush2.msra.mxu0 0.0
    %412 = vmatprep.subr.mxu0 0.0
    %413 = vmatpush2.msra.mxu0 0.0
    %414 = vmatprep.subr.mxu0 0.0
    %415 = vmatpush2.msra.mxu0 0.0
    %416 = vmatprep.subr.mxu0 0.0
    %417 = vmatpush2.msra.mxu0 0.0
    %418 = vmatprep.subr.mxu0 0.0
    %419 = vmatpush2.msra.mxu0 0.0
    %420 = vmatprep.subr.mxu0 0.0
    %421 = vmatpush2.msra.mxu0 0.0
    %422 = vmatprep.subr.mxu0 0.0
    %423 = vmatpush2.msra.mxu0 0.0
    %424 = vmatprep.mubr.f32.mxu0 0.0
    %425 = vmatmul.mubr.f32.gmra.mxu0 %v351
    %v426 = vpop.f32.mrf.mxu0
    %v427 = vadd.f32 %v348, %v426
    %v428 = vpop.f32.mrf.mxu0
    %v429 = vadd.f32 %v348, %v428
    %430 = vdwg.mxu0
    %432 = vrot.lane.b32.xlu0 %v427, 112
    %v433 = vpop.permute.xlu0 %432
    %435 = vrot.lane.b32.xlu0 %v427, 96
    %v436 = vpop.permute.xlu0 %435
    %438 = vrot.lane.b32.xlu0 %v427, 80
    %v439 = vpop.permute.xlu0 %438
    %441 = vrot.lane.b32.xlu0 %v427, 64
    %v442 = vpop.permute.xlu0 %441
    %444 = vrot.lane.b32.xlu0 %v427, 48
    %v445 = vpop.permute.xlu0 %444
    %447 = vrot.lane.b32.xlu0 %v427, 32
    %v448 = vpop.permute.xlu0 %447
    %450 = vrot.lane.b32.xlu0 %v427, 16
    %v451 = vpop.permute.xlu0 %450
    %454 = vrot.lane.b32.xlu0 %v429, 112
    %v455 = vpop.permute.xlu0 %454
    %457 = vrot.lane.b32.xlu0 %v429, 96
    %v458 = vpop.permute.xlu0 %457
    %460 = vrot.lane.b32.xlu0 %v429, 80
    %v461 = vpop.permute.xlu0 %460
    %463 = vrot.lane.b32.xlu0 %v429, 64
    %v464 = vpop.permute.xlu0 %463
    %466 = vrot.lane.b32.xlu0 %v429, 48
    %v467 = vpop.permute.xlu0 %466
    %469 = vrot.lane.b32.xlu0 %v429, 32
    %v470 = vpop.permute.xlu0 %469
    %472 = vrot.lane.b32.xlu0 %v429, 16
    %v473 = vpop.permute.xlu0 %472
    %v475 = vcombine.low %v427, %v436
    %v477 = vunpack.c.l.s4 1983009808
    %v478 = vunpack.c.0.s8 %v477
    %v479 = vlaneseq
    %v480 = vshrl.u32 %v479, 7
    %v481 = vsub.s32 %v478, %v480
    %v482 = vrot.slane %v475, %v481
    %v483 = vcombine.low %v433, %v439
    %v485 = vunpack.c.l.s4 1983009808
    %v486 = vunpack.c.0.s8 %v485
    %v487 = vlaneseq
    %v488 = vshrl.u32 %v487, 7
    %v489 = vsub.s32 %v486, %v488
    %v490 = vrot.slane %v483, %v489
    %v491 = vcombine.low %v442, %v448
    %v493 = vunpack.c.l.s4 1983009808
    %v494 = vunpack.c.0.s8 %v493
    %v495 = vlaneseq
    %v496 = vshrl.u32 %v495, 7
    %v497 = vsub.s32 %v494, %v496
    %v498 = vrot.slane %v491, %v497
    %v499 = vcombine.low %v445, %v451
    %v501 = vunpack.c.l.s4 1983009808
    %v502 = vunpack.c.0.s8 %v501
    %v503 = vlaneseq
    %v504 = vshrl.u32 %v503, 7
    %v505 = vsub.s32 %v502, %v504
    %v506 = vrot.slane %v499, %v505
    %v507 = vcombine.low %v482, %v490
    %v509 = vunpack.c.l.s4 1934713408
    %v510 = vunpack.c.0.s8 %v509
    %v511 = vlaneseq
    %v512 = vshrl.u32 %v511, 7
    %v513 = vsub.s32 %v510, %v512
    %v514 = vrot.slane %v507, %v513
    %v515 = vcombine.low %v498, %v506
    %v517 = vunpack.c.l.s4 1934713408
    %v518 = vunpack.c.0.s8 %v517
    %v519 = vlaneseq
    %v520 = vshrl.u32 %v519, 7
    %v521 = vsub.s32 %v518, %v520
    %v522 = vrot.slane %v515, %v521
    %v523 = vcombine.low %v514, %v522
    %v524 = vcombine.high %v514, %v522
    %v525 = vcombine.low %v429, %v458
    %v527 = vunpack.c.l.s4 1983009808
    %v528 = vunpack.c.0.s8 %v527
    %v529 = vlaneseq
    %v530 = vshrl.u32 %v529, 7
    %v531 = vsub.s32 %v528, %v530
    %v532 = vrot.slane %v525, %v531
    %v533 = vcombine.low %v455, %v461
    %v535 = vunpack.c.l.s4 1983009808
    %v536 = vunpack.c.0.s8 %v535
    %v537 = vlaneseq
    %v538 = vshrl.u32 %v537, 7
    %v539 = vsub.s32 %v536, %v538
    %v540 = vrot.slane %v533, %v539
    %v541 = vcombine.low %v464, %v470
    %v543 = vunpack.c.l.s4 1983009808
    %v544 = vunpack.c.0.s8 %v543
    %v545 = vlaneseq
    %v546 = vshrl.u32 %v545, 7
    %v547 = vsub.s32 %v544, %v546
    %v548 = vrot.slane %v541, %v547
    %v549 = vcombine.low %v467, %v473
    %v551 = vunpack.c.l.s4 1983009808
    %v552 = vunpack.c.0.s8 %v551
    %v553 = vlaneseq
    %v554 = vshrl.u32 %v553, 7
    %v555 = vsub.s32 %v552, %v554
    %v556 = vrot.slane %v549, %v555
    %v557 = vcombine.low %v532, %v540
    %v559 = vunpack.c.l.s4 1934713408
    %v560 = vunpack.c.0.s8 %v559
    %v561 = vlaneseq
    %v562 = vshrl.u32 %v561, 7
    %v563 = vsub.s32 %v560, %v562
    %v564 = vrot.slane %v557, %v563
    %v565 = vcombine.low %v548, %v556
    %v567 = vunpack.c.l.s4 1934713408
    %v568 = vunpack.c.0.s8 %v567
    %v569 = vlaneseq
    %v570 = vshrl.u32 %v569, 7
    %v571 = vsub.s32 %v568, %v570
    %v572 = vrot.slane %v565, %v571
    %v573 = vcombine.low %v564, %v572
    %v574 = vcombine.high %v564, %v572
    %s576 = vtos %v36
    %v577 = vstv %s576
    %v579 = vadd.f32 %v523, %v577
    %v580 = vadd.f32 %v573, %v577
    %v582 = vsel %vm243, %v579, 0
    %v585 = vsel %vm243, %v580, 0
    %587 = vmatprep.subr.mxu0 0.0
    %588 = vmatpush1.msra.mxu0 0.0
    %589 = vmatprep.subr.mxu0 0.0
    %590 = vmatpush1.msra.mxu0 0.0
    %591 = vmatprep.subr.mxu0 0.0
    %592 = vmatpush1.msra.mxu0 0.0
    %593 = vmatprep.subr.mxu0 0.0
    %594 = vmatpush1.msra.mxu0 0.0
    %595 = vmatprep.subr.mxu0 0.0
    %596 = vmatpush1.msra.mxu0 0.0
    %597 = vmatprep.subr.mxu0 0.0
    %598 = vmatpush1.msra.mxu0 0.0
    %599 = vmatprep.subr.mxu0 0.0
    %600 = vmatpush1.msra.mxu0 0.0
    %601 = vmatprep.subr.mxu0 0.0
    %602 = vmatpush1.msra.mxu0 0.0
    %603 = vmatprep.subr.mxu0 0.0
    %604 = vmatpush1.msra.mxu0 0.0
    %605 = vmatprep.subr.mxu0 0.0
    %606 = vmatpush1.msra.mxu0 0.0
    %607 = vmatprep.subr.mxu0 0.0
    %608 = vmatpush1.msra.mxu0 0.0
    %609 = vmatprep.subr.mxu0 0.0
    %610 = vmatpush1.msra.mxu0 0.0
    %611 = vmatprep.subr.mxu0 0.0
    %612 = vmatpush1.msra.mxu0 0.0
    %613 = vmatprep.subr.mxu0 0.0
    %614 = vmatpush1.msra.mxu0 0.0
    %615 = vmatprep.subr.mxu0 0.0
    %616 = vmatpush1.msra.mxu0 %v42
    %617 = vmatprep.subr.mxu0 0.0
    %618 = vmatpush1.msra.mxu0 %v41
    %619 = vmatprep.subr.mxu0 0.0
    %620 = vmatpush2.msra.mxu0 0.0
    %621 = vmatprep.subr.mxu0 0.0
    %622 = vmatpush2.msra.mxu0 0.0
    %623 = vmatprep.subr.mxu0 0.0
    %624 = vmatpush2.msra.mxu0 0.0
    %625 = vmatprep.subr.mxu0 0.0
    %626 = vmatpush2.msra.mxu0 0.0
    %627 = vmatprep.subr.mxu0 0.0
    %628 = vmatpush2.msra.mxu0 0.0
    %629 = vmatprep.subr.mxu0 0.0
    %630 = vmatpush2.msra.mxu0 0.0
    %631 = vmatprep.subr.mxu0 0.0
    %632 = vmatpush2.msra.mxu0 0.0
    %633 = vmatprep.subr.mxu0 0.0
    %634 = vmatpush2.msra.mxu0 0.0
    %635 = vmatprep.subr.mxu0 0.0
    %636 = vmatpush2.msra.mxu0 0.0
    %637 = vmatprep.subr.mxu0 0.0
    %638 = vmatpush2.msra.mxu0 0.0
    %639 = vmatprep.subr.mxu0 0.0
    %640 = vmatpush2.msra.mxu0 0.0
    %641 = vmatprep.subr.mxu0 0.0
    %642 = vmatpush2.msra.mxu0 0.0
    %643 = vmatprep.subr.mxu0 0.0
    %644 = vmatpush2.msra.mxu0 0.0
    %645 = vmatprep.subr.mxu0 0.0
    %646 = vmatpush2.msra.mxu0 0.0
    %647 = vmatprep.subr.mxu0 0.0
    %648 = vmatpush2.msra.mxu0 0.0
    %649 = vmatprep.subr.mxu0 0.0
    %650 = vmatpush2.msra.mxu0 0.0
    %651 = vmatprep.mubr.f32.mxu0 0.0
    %652 = vmatmul.mubr.f32.gmra.mxu0 %v582
    %v653 = vpop.f32.mrf.mxu0
    %v654 = vadd.f32 0.0, %v653
    %v655 = vpop.f32.mrf.mxu0
    %656 = vmatprep.mubr.f32.mxu0 0.0
    %657 = vmatmul.mubr.f32.gmra.mxu0 %v585
    %v658 = vpop.f32.mrf.mxu0
    %v659 = vadd.f32 0.0, %v658
    %v660 = vpop.f32.mrf.mxu0
    %661 = vdwg.mxu0
    %v663 = vsel %vm243, %v37, 0
    %v666 = vsel %vm243, %v38, 0
    %v669 = vsel %vm243, %v39, 0
    %v672 = vsel %vm243, %v40, 0
    %674 = vmatprep.subr.mxu0 0.0
    %675 = vmatpush1.msra.mxu0 0.0
    %676 = vmatprep.subr.mxu0 0.0
    %677 = vmatpush1.msra.mxu0 0.0
    %678 = vmatprep.subr.mxu0 0.0
    %679 = vmatpush1.msra.mxu0 0.0
    %680 = vmatprep.subr.mxu0 0.0
    %681 = vmatpush1.msra.mxu0 0.0
    %682 = vmatprep.subr.mxu0 0.0
    %683 = vmatpush1.msra.mxu0 0.0
    %684 = vmatprep.subr.mxu0 0.0
    %685 = vmatpush1.msra.mxu0 0.0
    %686 = vmatprep.subr.mxu0 0.0
    %687 = vmatpush1.msra.mxu0 0.0
    %688 = vmatprep.subr.mxu0 0.0
    %689 = vmatpush1.msra.mxu0 0.0
    %690 = vmatprep.subr.mxu0 0.0
    %691 = vmatpush1.msra.mxu0 0.0
    %692 = vmatprep.subr.mxu0 0.0
    %693 = vmatpush1.msra.mxu0 0.0
    %694 = vmatprep.subr.mxu0 0.0
    %695 = vmatpush1.msra.mxu0 0.0
    %696 = vmatprep.subr.mxu0 0.0
    %697 = vmatpush1.msra.mxu0 0.0
    %698 = vmatprep.subr.mxu0 0.0
    %699 = vmatpush1.msra.mxu0 0.0
    %700 = vmatprep.subr.mxu0 0.0
    %701 = vmatpush1.msra.mxu0 0.0
    %702 = vmatprep.subr.mxu0 0.0
    %703 = vmatpush1.msra.mxu0 %v659
    %704 = vmatprep.subr.mxu0 0.0
    %705 = vmatpush1.msra.mxu0 %v654
    %706 = vmatprep.subr.mxu0 0.0
    %707 = vmatpush2.msra.mxu0 0.0
    %708 = vmatprep.subr.mxu0 0.0
    %709 = vmatpush2.msra.mxu0 0.0
    %710 = vmatprep.subr.mxu0 0.0
    %711 = vmatpush2.msra.mxu0 0.0
    %712 = vmatprep.subr.mxu0 0.0
    %713 = vmatpush2.msra.mxu0 0.0
    %714 = vmatprep.subr.mxu0 0.0
    %715 = vmatpush2.msra.mxu0 0.0
    %716 = vmatprep.subr.mxu0 0.0
    %717 = vmatpush2.msra.mxu0 0.0
    %718 = vmatprep.subr.mxu0 0.0
    %719 = vmatpush2.msra.mxu0 0.0
    %720 = vmatprep.subr.mxu0 0.0
    %721 = vmatpush2.msra.mxu0 0.0
    %722 = vmatprep.subr.mxu0 0.0
    %723 = vmatpush2.msra.mxu0 0.0
    %724 = vmatprep.subr.mxu0 0.0
    %725 = vmatpush2.msra.mxu0 0.0
    %726 = vmatprep.subr.mxu0 0.0
    %727 = vmatpush2.msra.mxu0 0.0
    %728 = vmatprep.subr.mxu0 0.0
    %729 = vmatpush2.msra.mxu0 0.0
    %730 = vmatprep.subr.mxu0 0.0
    %731 = vmatpush2.msra.mxu0 0.0
    %732 = vmatprep.subr.mxu0 0.0
    %733 = vmatpush2.msra.mxu0 0.0
    %734 = vmatprep.subr.mxu0 0.0
    %735 = vmatpush2.msra.mxu0 0.0
    %736 = vmatprep.subr.mxu0 0.0
    %737 = vmatpush2.msra.mxu0 0.0
    %738 = vmatprep.mubr.f32.mxu0 0.0
    %739 = vmatmul.mubr.f32.gmra.mxu0 %v663
    %v740 = vpop.f32.mrf.mxu0
    %v741 = vadd.f32 0.0, %v740
    %v742 = vpop.f32.mrf.mxu0
    %743 = vmatprep.mubr.f32.mxu0 0.0
    %744 = vmatmul.mubr.f32.gmra.mxu0 %v666
    %v745 = vpop.f32.mrf.mxu0
    %v746 = vadd.f32 0.0, %v745
    %v747 = vpop.f32.mrf.mxu0
    %748 = vmatprep.mubr.f32.mxu0 0.0
    %749 = vmatmul.mubr.f32.gmra.mxu0 %v669
    %v750 = vpop.f32.mrf.mxu0
    %v751 = vadd.f32 0.0, %v750
    %v752 = vpop.f32.mrf.mxu0
    %753 = vmatprep.mubr.f32.mxu0 0.0
    %754 = vmatmul.mubr.f32.gmra.mxu0 %v672
    %v755 = vpop.f32.mrf.mxu0
    %v756 = vadd.f32 0.0, %v755
    %v757 = vpop.f32.mrf.mxu0
    %758 = vdwg.mxu0
    %759 = vst.msk [vmem:[#allocation5] sm:$0xff] %vm245, %v741
    %760 = vst.msk [vmem:[#allocation5 + $0x8] sm:$0xff] %vm245, %v746
    %761 = vst.msk [vmem:[#allocation5 + $0x10] sm:$0xff] %vm245, %v751
    %762 = vst.msk [vmem:[#allocation5 + $0x18] sm:$0xff] %vm245, %v756
    %v763 = vrot.slane %v36, 1
    %s764 = vtos %v763
    %v765 = vstv %s764
    %v767 = vadd.f32 %v524, %v765
    %v768 = vadd.f32 %v574, %v765
    %v770 = vsel %vm243, %v767, 0
    %v773 = vsel %vm243, %v768, 0
    %775 = vmatprep.subr.mxu0 0.0
    %776 = vmatpush1.msra.mxu0 0.0
    %777 = vmatprep.subr.mxu0 0.0
    %778 = vmatpush1.msra.mxu0 0.0
    %779 = vmatprep.subr.mxu0 0.0
    %780 = vmatpush1.msra.mxu0 0.0
    %781 = vmatprep.subr.mxu0 0.0
    %782 = vmatpush1.msra.mxu0 0.0
    %783 = vmatprep.subr.mxu0 0.0
    %784 = vmatpush1.msra.mxu0 0.0
    %785 = vmatprep.subr.mxu0 0.0
    %786 = vmatpush1.msra.mxu0 0.0
    %787 = vmatprep.subr.mxu0 0.0
    %788 = vmatpush1.msra.mxu0 0.0
    %789 = vmatprep.subr.mxu0 0.0
    %790 = vmatpush1.msra.mxu0 0.0
    %791 = vmatprep.subr.mxu0 0.0
    %792 = vmatpush1.msra.mxu0 0.0
    %793 = vmatprep.subr.mxu0 0.0
    %794 = vmatpush1.msra.mxu0 0.0
    %795 = vmatprep.subr.mxu0 0.0
    %796 = vmatpush1.msra.mxu0 0.0
    %797 = vmatprep.subr.mxu0 0.0
    %798 = vmatpush1.msra.mxu0 0.0
    %799 = vmatprep.subr.mxu0 0.0
    %800 = vmatpush1.msra.mxu0 0.0
    %801 = vmatprep.subr.mxu0 0.0
    %802 = vmatpush1.msra.mxu0 0.0
    %803 = vmatprep.subr.mxu0 0.0
    %804 = vmatpush1.msra.mxu0 %v42
    %805 = vmatprep.subr.mxu0 0.0
    %806 = vmatpush1.msra.mxu0 %v41
    %807 = vmatprep.subr.mxu0 0.0
    %808 = vmatpush2.msra.mxu0 0.0
    %809 = vmatprep.subr.mxu0 0.0
    %810 = vmatpush2.msra.mxu0 0.0
    %811 = vmatprep.subr.mxu0 0.0
    %812 = vmatpush2.msra.mxu0 0.0
    %813 = vmatprep.subr.mxu0 0.0
    %814 = vmatpush2.msra.mxu0 0.0
    %815 = vmatprep.subr.mxu0 0.0
    %816 = vmatpush2.msra.mxu0 0.0
    %817 = vmatprep.subr.mxu0 0.0
    %818 = vmatpush2.msra.mxu0 0.0
    %819 = vmatprep.subr.mxu0 0.0
    %820 = vmatpush2.msra.mxu0 0.0
    %821 = vmatprep.subr.mxu0 0.0
    %822 = vmatpush2.msra.mxu0 0.0
    %823 = vmatprep.subr.mxu0 0.0
    %824 = vmatpush2.msra.mxu0 0.0
    %825 = vmatprep.subr.mxu0 0.0
    %826 = vmatpush2.msra.mxu0 0.0
    %827 = vmatprep.subr.mxu0 0.0
    %828 = vmatpush2.msra.mxu0 0.0
    %829 = vmatprep.subr.mxu0 0.0
    %830 = vmatpush2.msra.mxu0 0.0
    %831 = vmatprep.subr.mxu0 0.0
    %832 = vmatpush2.msra.mxu0 0.0
    %833 = vmatprep.subr.mxu0 0.0
    %834 = vmatpush2.msra.mxu0 0.0
    %835 = vmatprep.subr.mxu0 0.0
    %836 = vmatpush2.msra.mxu0 0.0
    %837 = vmatprep.subr.mxu0 0.0
    %838 = vmatpush2.msra.mxu0 0.0
    %839 = vmatprep.mubr.f32.mxu0 0.0
    %840 = vmatmul.mubr.f32.gmra.mxu0 %v770
    %v841 = vpop.f32.mrf.mxu0
    %v842 = vadd.f32 0.0, %v841
    %v843 = vpop.f32.mrf.mxu0
    %844 = vmatprep.mubr.f32.mxu0 0.0
    %845 = vmatmul.mubr.f32.gmra.mxu0 %v773
    %v846 = vpop.f32.mrf.mxu0
    %v847 = vadd.f32 0.0, %v846
    %v848 = vpop.f32.mrf.mxu0
    %849 = vdwg.mxu0
    %850 = vmatprep.subr.mxu0 0.0
    %851 = vmatpush1.msra.mxu0 0.0
    %852 = vmatprep.subr.mxu0 0.0
    %853 = vmatpush1.msra.mxu0 0.0
    %854 = vmatprep.subr.mxu0 0.0
    %855 = vmatpush1.msra.mxu0 0.0
    %856 = vmatprep.subr.mxu0 0.0
    %857 = vmatpush1.msra.mxu0 0.0
    %858 = vmatprep.subr.mxu0 0.0
    %859 = vmatpush1.msra.mxu0 0.0
    %860 = vmatprep.subr.mxu0 0.0
    %861 = vmatpush1.msra.mxu0 0.0
    %862 = vmatprep.subr.mxu0 0.0
    %863 = vmatpush1.msra.mxu0 0.0
    %864 = vmatprep.subr.mxu0 0.0
    %865 = vmatpush1.msra.mxu0 0.0
    %866 = vmatprep.subr.mxu0 0.0
    %867 = vmatpush1.msra.mxu0 0.0
    %868 = vmatprep.subr.mxu0 0.0
    %869 = vmatpush1.msra.mxu0 0.0
    %870 = vmatprep.subr.mxu0 0.0
    %871 = vmatpush1.msra.mxu0 0.0
    %872 = vmatprep.subr.mxu0 0.0
    %873 = vmatpush1.msra.mxu0 0.0
    %874 = vmatprep.subr.mxu0 0.0
    %875 = vmatpush1.msra.mxu0 0.0
    %876 = vmatprep.subr.mxu0 0.0
    %877 = vmatpush1.msra.mxu0 0.0
    %878 = vmatprep.subr.mxu0 0.0
    %879 = vmatpush1.msra.mxu0 %v847
    %880 = vmatprep.subr.mxu0 0.0
    %881 = vmatpush1.msra.mxu0 %v842
    %882 = vmatprep.subr.mxu0 0.0
    %883 = vmatpush2.msra.mxu0 0.0
    %884 = vmatprep.subr.mxu0 0.0
    %885 = vmatpush2.msra.mxu0 0.0
    %886 = vmatprep.subr.mxu0 0.0
    %887 = vmatpush2.msra.mxu0 0.0
    %888 = vmatprep.subr.mxu0 0.0
    %889 = vmatpush2.msra.mxu0 0.0
    %890 = vmatprep.subr.mxu0 0.0
    %891 = vmatpush2.msra.mxu0 0.0
    %892 = vmatprep.subr.mxu0 0.0
    %893 = vmatpush2.msra.mxu0 0.0
    %894 = vmatprep.subr.mxu0 0.0
    %895 = vmatpush2.msra.mxu0 0.0
    %896 = vmatprep.subr.mxu0 0.0
    %897 = vmatpush2.msra.mxu0 0.0
    %898 = vmatprep.subr.mxu0 0.0
    %899 = vmatpush2.msra.mxu0 0.0
    %900 = vmatprep.subr.mxu0 0.0
    %901 = vmatpush2.msra.mxu0 0.0
    %902 = vmatprep.subr.mxu0 0.0
    %903 = vmatpush2.msra.mxu0 0.0
    %904 = vmatprep.subr.mxu0 0.0
    %905 = vmatpush2.msra.mxu0 0.0
    %906 = vmatprep.subr.mxu0 0.0
    %907 = vmatpush2.msra.mxu0 0.0
    %908 = vmatprep.subr.mxu0 0.0
    %909 = vmatpush2.msra.mxu0 0.0
    %910 = vmatprep.subr.mxu0 0.0
    %911 = vmatpush2.msra.mxu0 0.0
    %912 = vmatprep.subr.mxu0 0.0
    %913 = vmatpush2.msra.mxu0 0.0
    %914 = vmatprep.mubr.f32.mxu0 0.0
    %915 = vmatmul.mubr.f32.gmra.mxu0 %v663
    %v916 = vpop.f32.mrf.mxu0
    %v917 = vadd.f32 0.0, %v916
    %v918 = vpop.f32.mrf.mxu0
    %919 = vmatprep.mubr.f32.mxu0 0.0
    %920 = vmatmul.mubr.f32.gmra.mxu0 %v666
    %v921 = vpop.f32.mrf.mxu0
    %v922 = vadd.f32 0.0, %v921
    %v923 = vpop.f32.mrf.mxu0
    %924 = vmatprep.mubr.f32.mxu0 0.0
    %925 = vmatmul.mubr.f32.gmra.mxu0 %v669
    %v926 = vpop.f32.mrf.mxu0
    %v927 = vadd.f32 0.0, %v926
    %v928 = vpop.f32.mrf.mxu0
    %929 = vmatprep.mubr.f32.mxu0 0.0
    %930 = vmatmul.mubr.f32.gmra.mxu0 %v672
    %v931 = vpop.f32.mrf.mxu0
    %v932 = vadd.f32 0.0, %v931
    %v933 = vpop.f32.mrf.mxu0
    %934 = vdwg.mxu0
    %s935 = scalar_lea.vmem [#allocation5], 32
    %936 = vst.msk [vmem:[%s935] sm:$0xff] %vm245, %v917
    %937 = vst.msk [vmem:[%s935 + $0x8] sm:$0xff] %vm245, %v922
    %938 = vst.msk [vmem:[%s935 + $0x10] sm:$0xff] %vm245, %v927
    %939 = vst.msk [vmem:[%s935 + $0x18] sm:$0xff] %vm245, %v932
    %s940 = scalar_lea.vmem [#allocation2], 64
    %v941 = vld [vmem:[%s940] sm:$0xff]
    %v942 = vld [vmem:[%s940 + $0x8] sm:$0xff]
    %v943 = vld [vmem:[%s940 + $0x10] sm:$0xff]
    %v944 = vld [vmem:[%s940 + $0x18] sm:$0xff]
    %v945 = vld [vmem:[%s940 + $0x20] sm:$0xff]
    %v946 = vld [vmem:[%s940 + $0x28] sm:$0xff]
    %v947 = vld [vmem:[%s940 + $0x30] sm:$0xff]
    %v948 = vld [vmem:[%s940 + $0x38] sm:$0xff]
    %v949 = vcombine.low %v941, %v945
    %v950 = vcombine.high %v941, %v945
    %v952 = vunpack.c.l.s4 1983009808
    %v953 = vunpack.c.0.s8 %v952
    %v954 = vlaneseq
    %v955 = vshrl.u32 %v954, 7
    %v956 = vsub.s32 %v953, %v955
    %v957 = vrot.slane %v949, %v956
    %v959 = vunpack.c.l.s4 1983009808
    %v960 = vunpack.c.0.s8 %v959
    %v961 = vlaneseq
    %v962 = vshrl.u32 %v961, 7
    %v963 = vsub.s32 %v960, %v962
    %v964 = vrot.slane %v950, %v963
    %v965 = vcombine.low %v943, %v947
    %v966 = vcombine.high %v943, %v947
    %v968 = vunpack.c.l.s4 1983009808
    %v969 = vunpack.c.0.s8 %v968
    %v970 = vlaneseq
    %v971 = vshrl.u32 %v970, 7
    %v972 = vsub.s32 %v969, %v971
    %v973 = vrot.slane %v965, %v972
    %v975 = vunpack.c.l.s4 1983009808
    %v976 = vunpack.c.0.s8 %v975
    %v977 = vlaneseq
    %v978 = vshrl.u32 %v977, 7
    %v979 = vsub.s32 %v976, %v978
    %v980 = vrot.slane %v966, %v979
    %v981 = vcombine.low %v957, %v973
    %v982 = vcombine.high %v957, %v973
    %v984 = vunpack.c.l.s4 1934713408
    %v985 = vunpack.c.0.s8 %v984
    %v986 = vlaneseq
    %v987 = vshrl.u32 %v986, 7
    %v988 = vsub.s32 %v985, %v987
    %v989 = vrot.slane %v981, %v988
    %v991 = vunpack.c.l.s4 1934713408
    %v992 = vunpack.c.0.s8 %v991
    %v993 = vlaneseq
    %v994 = vshrl.u32 %v993, 7
    %v995 = vsub.s32 %v992, %v994
    %v996 = vrot.slane %v982, %v995
    %v997 = vcombine.low %v964, %v980
    %v998 = vcombine.high %v964, %v980
    %v1000 = vunpack.c.l.s4 1934713408
    %v1001 = vunpack.c.0.s8 %v1000
    %v1002 = vlaneseq
    %v1003 = vshrl.u32 %v1002, 7
    %v1004 = vsub.s32 %v1001, %v1003
    %v1005 = vrot.slane %v997, %v1004
    %v1007 = vunpack.c.l.s4 1934713408
    %v1008 = vunpack.c.0.s8 %v1007
    %v1009 = vlaneseq
    %v1010 = vshrl.u32 %v1009, 7
    %v1011 = vsub.s32 %v1008, %v1010
    %v1012 = vrot.slane %v998, %v1011
    %v1013 = vcombine.high %v989, 0.0
    %v1014 = vcombine.high %v996, 0.0
    %v1015 = vcombine.high %v1005, 0.0
    %v1016 = vcombine.high %v1012, 0.0
    %v1017 = vcombine.low %v942, %v946
    %v1018 = vcombine.high %v942, %v946
    %v1020 = vunpack.c.l.s4 1983009808
    %v1021 = vunpack.c.0.s8 %v1020
    %v1022 = vlaneseq
    %v1023 = vshrl.u32 %v1022, 7
    %v1024 = vsub.s32 %v1021, %v1023
    %v1025 = vrot.slane %v1017, %v1024
    %v1027 = vunpack.c.l.s4 1983009808
    %v1028 = vunpack.c.0.s8 %v1027
    %v1029 = vlaneseq
    %v1030 = vshrl.u32 %v1029, 7
    %v1031 = vsub.s32 %v1028, %v1030
    %v1032 = vrot.slane %v1018, %v1031
    %v1033 = vcombine.low %v944, %v948
    %v1034 = vcombine.high %v944, %v948
    %v1036 = vunpack.c.l.s4 1983009808
    %v1037 = vunpack.c.0.s8 %v1036
    %v1038 = vlaneseq
    %v1039 = vshrl.u32 %v1038, 7
    %v1040 = vsub.s32 %v1037, %v1039
    %v1041 = vrot.slane %v1033, %v1040
    %v1043 = vunpack.c.l.s4 1983009808
    %v1044 = vunpack.c.0.s8 %v1043
    %v1045 = vlaneseq
    %v1046 = vshrl.u32 %v1045, 7
    %v1047 = vsub.s32 %v1044, %v1046
    %v1048 = vrot.slane %v1034, %v1047
    %v1049 = vcombine.low %v1025, %v1041
    %v1050 = vcombine.high %v1025, %v1041
    %v1052 = vunpack.c.l.s4 1934713408
    %v1053 = vunpack.c.0.s8 %v1052
    %v1054 = vlaneseq
    %v1055 = vshrl.u32 %v1054, 7
    %v1056 = vsub.s32 %v1053, %v1055
    %v1057 = vrot.slane %v1049, %v1056
    %v1059 = vunpack.c.l.s4 1934713408
    %v1060 = vunpack.c.0.s8 %v1059
    %v1061 = vlaneseq
    %v1062 = vshrl.u32 %v1061, 7
    %v1063 = vsub.s32 %v1060, %v1062
    %v1064 = vrot.slane %v1050, %v1063
    %v1065 = vcombine.low %v1032, %v1048
    %v1066 = vcombine.high %v1032, %v1048
    %v1068 = vunpack.c.l.s4 1934713408
    %v1069 = vunpack.c.0.s8 %v1068
    %v1070 = vlaneseq
    %v1071 = vshrl.u32 %v1070, 7
    %v1072 = vsub.s32 %v1069, %v1071
    %v1073 = vrot.slane %v1065, %v1072
    %v1075 = vunpack.c.l.s4 1934713408
    %v1076 = vunpack.c.0.s8 %v1075
    %v1077 = vlaneseq
    %v1078 = vshrl.u32 %v1077, 7
    %v1079 = vsub.s32 %v1076, %v1078
    %v1080 = vrot.slane %v1066, %v1079
    %v1081 = vcombine.high %v1057, 0.0
    %v1082 = vcombine.high %v1064, 0.0
    %v1083 = vcombine.high %v1073, 0.0
    %v1084 = vcombine.high %v1080, 0.0
    %1086 = vrot.lane.b32.xlu0 %v1013, 16
    %v1087 = vpop.permute.xlu0 %1086
    %1090 = vrot.lane.b32.xlu0 %v996, 32
    %v1091 = vpop.permute.xlu0 %1090
    %1094 = vrot.lane.b32.xlu0 %v1014, 48
    %v1095 = vpop.permute.xlu0 %1094
    %1098 = vrot.lane.b32.xlu0 %v1005, 64
    %v1099 = vpop.permute.xlu0 %1098
    %1102 = vrot.lane.b32.xlu0 %v1015, 80
    %v1103 = vpop.permute.xlu0 %1102
    %1106 = vrot.lane.b32.xlu0 %v1012, 96
    %v1107 = vpop.permute.xlu0 %1106
    %1110 = vrot.lane.b32.xlu0 %v1016, 112
    %v1111 = vpop.permute.xlu0 %1110
    %1114 = vrot.lane.b32.xlu0 %v1081, 16
    %v1115 = vpop.permute.xlu0 %1114
    %1118 = vrot.lane.b32.xlu0 %v1064, 32
    %v1119 = vpop.permute.xlu0 %1118
    %1122 = vrot.lane.b32.xlu0 %v1082, 48
    %v1123 = vpop.permute.xlu0 %1122
    %1126 = vrot.lane.b32.xlu0 %v1073, 64
    %v1127 = vpop.permute.xlu0 %1126
    %1130 = vrot.lane.b32.xlu0 %v1083, 80
    %v1131 = vpop.permute.xlu0 %1130
    %1134 = vrot.lane.b32.xlu0 %v1080, 96
    %v1135 = vpop.permute.xlu0 %1134
    %1138 = vrot.lane.b32.xlu0 %v1084, 112
    %v1139 = vpop.permute.xlu0 %1138
    %v1141 = vsel %vm243, %v989, %v1087
    %v1142 = vsel %vm245, %v1141, %v1091
    %v1143 = vsel %vm247, %v1142, %v1095
    %v1144 = vsel %vm249, %v1143, %v1099
    %v1145 = vsel %vm251, %v1144, %v1103
    %v1146 = vsel %vm253, %v1145, %v1107
    %v1147 = vsel %vm255, %v1146, %v1111
    %v1148 = vsel %vm243, %v1057, %v1115
    %v1149 = vsel %vm245, %v1148, %v1119
    %v1150 = vsel %vm247, %v1149, %v1123
    %v1151 = vsel %vm249, %v1150, %v1127
    %v1152 = vsel %vm251, %v1151, %v1131
    %v1153 = vsel %vm253, %v1152, %v1135
    %v1154 = vsel %vm255, %v1153, %v1139
    %v1156 = vsel %vm353, %v1147, 0
    %v1159 = vsel %vm353, %v1154, 0
    %1161 = vmatprep.subr.mxu0 0.0
    %1162 = vmatpush1.msra.mxu0 0.0
    %1163 = vmatprep.subr.mxu0 0.0
    %1164 = vmatpush1.msra.mxu0 0.0
    %1165 = vmatprep.subr.mxu0 0.0
    %1166 = vmatpush1.msra.mxu0 0.0
    %1167 = vmatprep.subr.mxu0 0.0
    %1168 = vmatpush1.msra.mxu0 0.0
    %1169 = vmatprep.subr.mxu0 0.0
    %1170 = vmatpush1.msra.mxu0 0.0
    %1171 = vmatprep.subr.mxu0 0.0
    %1172 = vmatpush1.msra.mxu0 0.0
    %1173 = vmatprep.subr.mxu0 0.0
    %1174 = vmatpush1.msra.mxu0 0.0
    %1175 = vmatprep.subr.mxu0 0.0
    %1176 = vmatpush1.msra.mxu0 0.0
    %1177 = vmatprep.subr.mxu0 0.0
    %1178 = vmatpush1.msra.mxu0 0.0
    %1179 = vmatprep.subr.mxu0 0.0
    %1180 = vmatpush1.msra.mxu0 0.0
    %1181 = vmatprep.subr.mxu0 0.0
    %1182 = vmatpush1.msra.mxu0 0.0
    %1183 = vmatprep.subr.mxu0 0.0
    %1184 = vmatpush1.msra.mxu0 0.0
    %1185 = vmatprep.subr.mxu0 0.0
    %1186 = vmatpush1.msra.mxu0 0.0
    %1187 = vmatprep.subr.mxu0 0.0
    %1188 = vmatpush1.msra.mxu0 0.0
    %1189 = vmatprep.subr.mxu0 0.0
    %1190 = vmatpush1.msra.mxu0 0.0
    %1191 = vmatprep.subr.mxu0 %v1159
    %1192 = vmatpush1.msra.mxu0 %v1156
    %1193 = vmatprep.subr.mxu0 0.0
    %1194 = vmatpush2.msra.mxu0 0.0
    %1195 = vmatprep.subr.mxu0 0.0
    %1196 = vmatpush2.msra.mxu0 0.0
    %1197 = vmatprep.subr.mxu0 0.0
    %1198 = vmatpush2.msra.mxu0 0.0
    %1199 = vmatprep.subr.mxu0 0.0
    %1200 = vmatpush2.msra.mxu0 0.0
    %1201 = vmatprep.subr.mxu0 0.0
    %1202 = vmatpush2.msra.mxu0 0.0
    %1203 = vmatprep.subr.mxu0 0.0
    %1204 = vmatpush2.msra.mxu0 0.0
    %1205 = vmatprep.subr.mxu0 0.0
    %1206 = vmatpush2.msra.mxu0 0.0
    %1207 = vmatprep.subr.mxu0 0.0
    %1208 = vmatpush2.msra.mxu0 0.0
    %1209 = vmatprep.subr.mxu0 0.0
    %1210 = vmatpush2.msra.mxu0 0.0
    %1211 = vmatprep.subr.mxu0 0.0
    %1212 = vmatpush2.msra.mxu0 0.0
    %1213 = vmatprep.subr.mxu0 0.0
    %1214 = vmatpush2.msra.mxu0 0.0
    %1215 = vmatprep.subr.mxu0 0.0
    %1216 = vmatpush2.msra.mxu0 0.0
    %1217 = vmatprep.subr.mxu0 0.0
    %1218 = vmatpush2.msra.mxu0 0.0
    %1219 = vmatprep.subr.mxu0 0.0
    %1220 = vmatpush2.msra.mxu0 0.0
    %1221 = vmatprep.subr.mxu0 0.0
    %1222 = vmatpush2.msra.mxu0 0.0
    %1223 = vmatprep.subr.mxu0 0.0
    %1224 = vmatpush2.msra.mxu0 0.0
    %1225 = vmatprep.mubr.f32.mxu0 0.0
    %1226 = vmatmul.mubr.f32.gmra.mxu0 %v351
    %v1227 = vpop.f32.mrf.mxu0
    %v1228 = vadd.f32 %v348, %v1227
    %v1229 = vpop.f32.mrf.mxu0
    %v1230 = vadd.f32 %v348, %v1229
    %1231 = vdwg.mxu0
    %1233 = vrot.lane.b32.xlu0 %v1228, 112
    %v1234 = vpop.permute.xlu0 %1233
    %1236 = vrot.lane.b32.xlu0 %v1228, 96
    %v1237 = vpop.permute.xlu0 %1236
    %1239 = vrot.lane.b32.xlu0 %v1228, 80
    %v1240 = vpop.permute.xlu0 %1239
    %1242 = vrot.lane.b32.xlu0 %v1228, 64
    %v1243 = vpop.permute.xlu0 %1242
    %1245 = vrot.lane.b32.xlu0 %v1228, 48
    %v1246 = vpop.permute.xlu0 %1245
    %1248 = vrot.lane.b32.xlu0 %v1228, 32
    %v1249 = vpop.permute.xlu0 %1248
    %1251 = vrot.lane.b32.xlu0 %v1228, 16
    %v1252 = vpop.permute.xlu0 %1251
    %1255 = vrot.lane.b32.xlu0 %v1230, 112
    %v1256 = vpop.permute.xlu0 %1255
    %1258 = vrot.lane.b32.xlu0 %v1230, 96
    %v1259 = vpop.permute.xlu0 %1258
    %1261 = vrot.lane.b32.xlu0 %v1230, 80
    %v1262 = vpop.permute.xlu0 %1261
    %1264 = vrot.lane.b32.xlu0 %v1230, 64
    %v1265 = vpop.permute.xlu0 %1264
    %1267 = vrot.lane.b32.xlu0 %v1230, 48
    %v1268 = vpop.permute.xlu0 %1267
    %1270 = vrot.lane.b32.xlu0 %v1230, 32
    %v1271 = vpop.permute.xlu0 %1270
    %1273 = vrot.lane.b32.xlu0 %v1230, 16
    %v1274 = vpop.permute.xlu0 %1273
    %v1276 = vcombine.low %v1228, %v1237
    %v1278 = vunpack.c.l.s4 1983009808
    %v1279 = vunpack.c.0.s8 %v1278
    %v1280 = vlaneseq
    %v1281 = vshrl.u32 %v1280, 7
    %v1282 = vsub.s32 %v1279, %v1281
    %v1283 = vrot.slane %v1276, %v1282
    %v1284 = vcombine.low %v1234, %v1240
    %v1286 = vunpack.c.l.s4 1983009808
    %v1287 = vunpack.c.0.s8 %v1286
    %v1288 = vlaneseq
    %v1289 = vshrl.u32 %v1288, 7
    %v1290 = vsub.s32 %v1287, %v1289
    %v1291 = vrot.slane %v1284, %v1290
    %v1292 = vcombine.low %v1243, %v1249
    %v1294 = vunpack.c.l.s4 1983009808
    %v1295 = vunpack.c.0.s8 %v1294
    %v1296 = vlaneseq
    %v1297 = vshrl.u32 %v1296, 7
    %v1298 = vsub.s32 %v1295, %v1297
    %v1299 = vrot.slane %v1292, %v1298
    %v1300 = vcombine.low %v1246, %v1252
    %v1302 = vunpack.c.l.s4 1983009808
    %v1303 = vunpack.c.0.s8 %v1302
    %v1304 = vlaneseq
    %v1305 = vshrl.u32 %v1304, 7
    %v1306 = vsub.s32 %v1303, %v1305
    %v1307 = vrot.slane %v1300, %v1306
    %v1308 = vcombine.low %v1283, %v1291
    %v1310 = vunpack.c.l.s4 1934713408
    %v1311 = vunpack.c.0.s8 %v1310
    %v1312 = vlaneseq
    %v1313 = vshrl.u32 %v1312, 7
    %v1314 = vsub.s32 %v1311, %v1313
    %v1315 = vrot.slane %v1308, %v1314
    %v1316 = vcombine.low %v1299, %v1307
    %v1318 = vunpack.c.l.s4 1934713408
    %v1319 = vunpack.c.0.s8 %v1318
    %v1320 = vlaneseq
    %v1321 = vshrl.u32 %v1320, 7
    %v1322 = vsub.s32 %v1319, %v1321
    %v1323 = vrot.slane %v1316, %v1322
    %v1324 = vcombine.low %v1315, %v1323
    %v1325 = vcombine.high %v1315, %v1323
    %v1326 = vcombine.low %v1230, %v1259
    %v1328 = vunpack.c.l.s4 1983009808
    %v1329 = vunpack.c.0.s8 %v1328
    %v1330 = vlaneseq
    %v1331 = vshrl.u32 %v1330, 7
    %v1332 = vsub.s32 %v1329, %v1331
    %v1333 = vrot.slane %v1326, %v1332
    %v1334 = vcombine.low %v1256, %v1262
    %v1336 = vunpack.c.l.s4 1983009808
    %v1337 = vunpack.c.0.s8 %v1336
    %v1338 = vlaneseq
    %v1339 = vshrl.u32 %v1338, 7
    %v1340 = vsub.s32 %v1337, %v1339
    %v1341 = vrot.slane %v1334, %v1340
    %v1342 = vcombine.low %v1265, %v1271
    %v1344 = vunpack.c.l.s4 1983009808
    %v1345 = vunpack.c.0.s8 %v1344
    %v1346 = vlaneseq
    %v1347 = vshrl.u32 %v1346, 7
    %v1348 = vsub.s32 %v1345, %v1347
    %v1349 = vrot.slane %v1342, %v1348
    %v1350 = vcombine.low %v1268, %v1274
    %v1352 = vunpack.c.l.s4 1983009808
    %v1353 = vunpack.c.0.s8 %v1352
    %v1354 = vlaneseq
    %v1355 = vshrl.u32 %v1354, 7
    %v1356 = vsub.s32 %v1353, %v1355
    %v1357 = vrot.slane %v1350, %v1356
    %v1358 = vcombine.low %v1333, %v1341
    %v1360 = vunpack.c.l.s4 1934713408
    %v1361 = vunpack.c.0.s8 %v1360
    %v1362 = vlaneseq
    %v1363 = vshrl.u32 %v1362, 7
    %v1364 = vsub.s32 %v1361, %v1363
    %v1365 = vrot.slane %v1358, %v1364
    %v1366 = vcombine.low %v1349, %v1357
    %v1368 = vunpack.c.l.s4 1934713408
    %v1369 = vunpack.c.0.s8 %v1368
    %v1370 = vlaneseq
    %v1371 = vshrl.u32 %v1370, 7
    %v1372 = vsub.s32 %v1369, %v1371
    %v1373 = vrot.slane %v1366, %v1372
    %v1374 = vcombine.low %v1365, %v1373
    %v1375 = vcombine.high %v1365, %v1373
    %v1376 = vadd.f32 %v1324, %v577
    %v1377 = vadd.f32 %v1374, %v577
    %v1379 = vsel %vm243, %v1376, 0
    %v1382 = vsel %vm243, %v1377, 0
    %1384 = vmatprep.subr.mxu0 0.0
    %1385 = vmatpush1.msra.mxu0 0.0
    %1386 = vmatprep.subr.mxu0 0.0
    %1387 = vmatpush1.msra.mxu0 0.0
    %1388 = vmatprep.subr.mxu0 0.0
    %1389 = vmatpush1.msra.mxu0 0.0
    %1390 = vmatprep.subr.mxu0 0.0
    %1391 = vmatpush1.msra.mxu0 0.0
    %1392 = vmatprep.subr.mxu0 0.0
    %1393 = vmatpush1.msra.mxu0 0.0
    %1394 = vmatprep.subr.mxu0 0.0
    %1395 = vmatpush1.msra.mxu0 0.0
    %1396 = vmatprep.subr.mxu0 0.0
    %1397 = vmatpush1.msra.mxu0 0.0
    %1398 = vmatprep.subr.mxu0 0.0
    %1399 = vmatpush1.msra.mxu0 0.0
    %1400 = vmatprep.subr.mxu0 0.0
    %1401 = vmatpush1.msra.mxu0 0.0
    %1402 = vmatprep.subr.mxu0 0.0
    %1403 = vmatpush1.msra.mxu0 0.0
    %1404 = vmatprep.subr.mxu0 0.0
    %1405 = vmatpush1.msra.mxu0 0.0
    %1406 = vmatprep.subr.mxu0 0.0
    %1407 = vmatpush1.msra.mxu0 0.0
    %1408 = vmatprep.subr.mxu0 0.0
    %1409 = vmatpush1.msra.mxu0 0.0
    %1410 = vmatprep.subr.mxu0 0.0
    %1411 = vmatpush1.msra.mxu0 0.0
    %1412 = vmatprep.subr.mxu0 0.0
    %1413 = vmatpush1.msra.mxu0 %v42
    %1414 = vmatprep.subr.mxu0 0.0
    %1415 = vmatpush1.msra.mxu0 %v41
    %1416 = vmatprep.subr.mxu0 0.0
    %1417 = vmatpush2.msra.mxu0 0.0
    %1418 = vmatprep.subr.mxu0 0.0
    %1419 = vmatpush2.msra.mxu0 0.0
    %1420 = vmatprep.subr.mxu0 0.0
    %1421 = vmatpush2.msra.mxu0 0.0
    %1422 = vmatprep.subr.mxu0 0.0
    %1423 = vmatpush2.msra.mxu0 0.0
    %1424 = vmatprep.subr.mxu0 0.0
    %1425 = vmatpush2.msra.mxu0 0.0
    %1426 = vmatprep.subr.mxu0 0.0
    %1427 = vmatpush2.msra.mxu0 0.0
    %1428 = vmatprep.subr.mxu0 0.0
    %1429 = vmatpush2.msra.mxu0 0.0
    %1430 = vmatprep.subr.mxu0 0.0
    %1431 = vmatpush2.msra.mxu0 0.0
    %1432 = vmatprep.subr.mxu0 0.0
    %1433 = vmatpush2.msra.mxu0 0.0
    %1434 = vmatprep.subr.mxu0 0.0
    %1435 = vmatpush2.msra.mxu0 0.0
    %1436 = vmatprep.subr.mxu0 0.0
    %1437 = vmatpush2.msra.mxu0 0.0
    %1438 = vmatprep.subr.mxu0 0.0
    %1439 = vmatpush2.msra.mxu0 0.0
    %1440 = vmatprep.subr.mxu0 0.0
    %1441 = vmatpush2.msra.mxu0 0.0
    %1442 = vmatprep.subr.mxu0 0.0
    %1443 = vmatpush2.msra.mxu0 0.0
    %1444 = vmatprep.subr.mxu0 0.0
    %1445 = vmatpush2.msra.mxu0 0.0
    %1446 = vmatprep.subr.mxu0 0.0
    %1447 = vmatpush2.msra.mxu0 0.0
    %1448 = vmatprep.mubr.f32.mxu0 0.0
    %1449 = vmatmul.mubr.f32.gmra.mxu0 %v1379
    %v1450 = vpop.f32.mrf.mxu0
    %v1451 = vadd.f32 0.0, %v1450
    %v1452 = vpop.f32.mrf.mxu0
    %1453 = vmatprep.mubr.f32.mxu0 0.0
    %1454 = vmatmul.mubr.f32.gmra.mxu0 %v1382
    %v1455 = vpop.f32.mrf.mxu0
    %v1456 = vadd.f32 0.0, %v1455
    %v1457 = vpop.f32.mrf.mxu0
    %1458 = vdwg.mxu0
    %1459 = vmatprep.subr.mxu0 0.0
    %1460 = vmatpush1.msra.mxu0 0.0
    %1461 = vmatprep.subr.mxu0 0.0
    %1462 = vmatpush1.msra.mxu0 0.0
    %1463 = vmatprep.subr.mxu0 0.0
    %1464 = vmatpush1.msra.mxu0 0.0
    %1465 = vmatprep.subr.mxu0 0.0
    %1466 = vmatpush1.msra.mxu0 0.0
    %1467 = vmatprep.subr.mxu0 0.0
    %1468 = vmatpush1.msra.mxu0 0.0
    %1469 = vmatprep.subr.mxu0 0.0
    %1470 = vmatpush1.msra.mxu0 0.0
    %1471 = vmatprep.subr.mxu0 0.0
    %1472 = vmatpush1.msra.mxu0 0.0
    %1473 = vmatprep.subr.mxu0 0.0
    %1474 = vmatpush1.msra.mxu0 0.0
    %1475 = vmatprep.subr.mxu0 0.0
    %1476 = vmatpush1.msra.mxu0 0.0
    %1477 = vmatprep.subr.mxu0 0.0
    %1478 = vmatpush1.msra.mxu0 0.0
    %1479 = vmatprep.subr.mxu0 0.0
    %1480 = vmatpush1.msra.mxu0 0.0
    %1481 = vmatprep.subr.mxu0 0.0
    %1482 = vmatpush1.msra.mxu0 0.0
    %1483 = vmatprep.subr.mxu0 0.0
    %1484 = vmatpush1.msra.mxu0 0.0
    %1485 = vmatprep.subr.mxu0 0.0
    %1486 = vmatpush1.msra.mxu0 0.0
    %1487 = vmatprep.subr.mxu0 0.0
    %1488 = vmatpush1.msra.mxu0 %v1456
    %1489 = vmatprep.subr.mxu0 0.0
    %1490 = vmatpush1.msra.mxu0 %v1451
    %1491 = vmatprep.subr.mxu0 0.0
    %1492 = vmatpush2.msra.mxu0 0.0
    %1493 = vmatprep.subr.mxu0 0.0
    %1494 = vmatpush2.msra.mxu0 0.0
    %1495 = vmatprep.subr.mxu0 0.0
    %1496 = vmatpush2.msra.mxu0 0.0
    %1497 = vmatprep.subr.mxu0 0.0
    %1498 = vmatpush2.msra.mxu0 0.0
    %1499 = vmatprep.subr.mxu0 0.0
    %1500 = vmatpush2.msra.mxu0 0.0
    %1501 = vmatprep.subr.mxu0 0.0
    %1502 = vmatpush2.msra.mxu0 0.0
    %1503 = vmatprep.subr.mxu0 0.0
    %1504 = vmatpush2.msra.mxu0 0.0
    %1505 = vmatprep.subr.mxu0 0.0
    %1506 = vmatpush2.msra.mxu0 0.0
    %1507 = vmatprep.subr.mxu0 0.0
    %1508 = vmatpush2.msra.mxu0 0.0
    %1509 = vmatprep.subr.mxu0 0.0
    %1510 = vmatpush2.msra.mxu0 0.0
    %1511 = vmatprep.subr.mxu0 0.0
    %1512 = vmatpush2.msra.mxu0 0.0
    %1513 = vmatprep.subr.mxu0 0.0
    %1514 = vmatpush2.msra.mxu0 0.0
    %1515 = vmatprep.subr.mxu0 0.0
    %1516 = vmatpush2.msra.mxu0 0.0
    %1517 = vmatprep.subr.mxu0 0.0
    %1518 = vmatpush2.msra.mxu0 0.0
    %1519 = vmatprep.subr.mxu0 0.0
    %1520 = vmatpush2.msra.mxu0 0.0
    %1521 = vmatprep.subr.mxu0 0.0
    %1522 = vmatpush2.msra.mxu0 0.0
    %1523 = vmatprep.mubr.f32.mxu0 0.0
    %1524 = vmatmul.mubr.f32.gmra.mxu0 %v663
    %v1525 = vpop.f32.mrf.mxu0
    %v1526 = vadd.f32 0.0, %v1525
    %v1527 = vpop.f32.mrf.mxu0
    %1528 = vmatprep.mubr.f32.mxu0 0.0
    %1529 = vmatmul.mubr.f32.gmra.mxu0 %v666
    %v1530 = vpop.f32.mrf.mxu0
    %v1531 = vadd.f32 0.0, %v1530
    %v1532 = vpop.f32.mrf.mxu0
    %1533 = vmatprep.mubr.f32.mxu0 0.0
    %1534 = vmatmul.mubr.f32.gmra.mxu0 %v669
    %v1535 = vpop.f32.mrf.mxu0
    %v1536 = vadd.f32 0.0, %v1535
    %v1537 = vpop.f32.mrf.mxu0
    %1538 = vmatprep.mubr.f32.mxu0 0.0
    %1539 = vmatmul.mubr.f32.gmra.mxu0 %v672
    %v1540 = vpop.f32.mrf.mxu0
    %v1541 = vadd.f32 0.0, %v1540
    %v1542 = vpop.f32.mrf.mxu0
    %1543 = vdwg.mxu0
    %s1544 = scalar_lea.vmem [#allocation5], 64
    %1545 = vst.msk [vmem:[%s1544] sm:$0xff] %vm245, %v1526
    %1546 = vst.msk [vmem:[%s1544 + $0x8] sm:$0xff] %vm245, %v1531
    %1547 = vst.msk [vmem:[%s1544 + $0x10] sm:$0xff] %vm245, %v1536
    %1548 = vst.msk [vmem:[%s1544 + $0x18] sm:$0xff] %vm245, %v1541
    %v1549 = vadd.f32 %v1325, %v765
    %v1550 = vadd.f32 %v1375, %v765
    %v1552 = vsel %vm243, %v1549, 0
    %v1555 = vsel %vm243, %v1550, 0
    %1557 = vmatprep.subr.mxu0 0.0
    %1558 = vmatpush1.msra.mxu0 0.0
    %1559 = vmatprep.subr.mxu0 0.0
    %1560 = vmatpush1.msra.mxu0 0.0
    %1561 = vmatprep.subr.mxu0 0.0
    %1562 = vmatpush1.msra.mxu0 0.0
    %1563 = vmatprep.subr.mxu0 0.0
    %1564 = vmatpush1.msra.mxu0 0.0
    %1565 = vmatprep.subr.mxu0 0.0
    %1566 = vmatpush1.msra.mxu0 0.0
    %1567 = vmatprep.subr.mxu0 0.0
    %1568 = vmatpush1.msra.mxu0 0.0
    %1569 = vmatprep.subr.mxu0 0.0
    %1570 = vmatpush1.msra.mxu0 0.0
    %1571 = vmatprep.subr.mxu0 0.0
    %1572 = vmatpush1.msra.mxu0 0.0
    %1573 = vmatprep.subr.mxu0 0.0
    %1574 = vmatpush1.msra.mxu0 0.0
    %1575 = vmatprep.subr.mxu0 0.0
    %1576 = vmatpush1.msra.mxu0 0.0
    %1577 = vmatprep.subr.mxu0 0.0
    %1578 = vmatpush1.msra.mxu0 0.0
    %1579 = vmatprep.subr.mxu0 0.0
    %1580 = vmatpush1.msra.mxu0 0.0
    %1581 = vmatprep.subr.mxu0 0.0
    %1582 = vmatpush1.msra.mxu0 0.0
    %1583 = vmatprep.subr.mxu0 0.0
    %1584 = vmatpush1.msra.mxu0 0.0
    %1585 = vmatprep.subr.mxu0 0.0
    %1586 = vmatpush1.msra.mxu0 %v42
    %1587 = vmatprep.subr.mxu0 0.0
    %1588 = vmatpush1.msra.mxu0 %v41
    %1589 = vmatprep.subr.mxu0 0.0
    %1590 = vmatpush2.msra.mxu0 0.0
    %1591 = vmatprep.subr.mxu0 0.0
    %1592 = vmatpush2.msra.mxu0 0.0
    %1593 = vmatprep.subr.mxu0 0.0
    %1594 = vmatpush2.msra.mxu0 0.0
    %1595 = vmatprep.subr.mxu0 0.0
    %1596 = vmatpush2.msra.mxu0 0.0
    %1597 = vmatprep.subr.mxu0 0.0
    %1598 = vmatpush2.msra.mxu0 0.0
    %1599 = vmatprep.subr.mxu0 0.0
    %1600 = vmatpush2.msra.mxu0 0.0
    %1601 = vmatprep.subr.mxu0 0.0
    %1602 = vmatpush2.msra.mxu0 0.0
    %1603 = vmatprep.subr.mxu0 0.0
    %1604 = vmatpush2.msra.mxu0 0.0
    %1605 = vmatprep.subr.mxu0 0.0
    %1606 = vmatpush2.msra.mxu0 0.0
    %1607 = vmatprep.subr.mxu0 0.0
    %1608 = vmatpush2.msra.mxu0 0.0
    %1609 = vmatprep.subr.mxu0 0.0
    %1610 = vmatpush2.msra.mxu0 0.0
    %1611 = vmatprep.subr.mxu0 0.0
    %1612 = vmatpush2.msra.mxu0 0.0
    %1613 = vmatprep.subr.mxu0 0.0
    %1614 = vmatpush2.msra.mxu0 0.0
    %1615 = vmatprep.subr.mxu0 0.0
    %1616 = vmatpush2.msra.mxu0 0.0
    %1617 = vmatprep.subr.mxu0 0.0
    %1618 = vmatpush2.msra.mxu0 0.0
    %1619 = vmatprep.subr.mxu0 0.0
    %1620 = vmatpush2.msra.mxu0 0.0
    %1621 = vmatprep.mubr.f32.mxu0 0.0
    %1622 = vmatmul.mubr.f32.gmra.mxu0 %v1552
    %v1623 = vpop.f32.mrf.mxu0
    %v1624 = vadd.f32 0.0, %v1623
    %v1625 = vpop.f32.mrf.mxu0
    %1626 = vmatprep.mubr.f32.mxu0 0.0
    %1627 = vmatmul.mubr.f32.gmra.mxu0 %v1555
    %v1628 = vpop.f32.mrf.mxu0
    %v1629 = vadd.f32 0.0, %v1628
    %v1630 = vpop.f32.mrf.mxu0
    %1631 = vdwg.mxu0
    %1632 = vmatprep.subr.mxu0 0.0
    %1633 = vmatpush1.msra.mxu0 0.0
    %1634 = vmatprep.subr.mxu0 0.0
    %1635 = vmatpush1.msra.mxu0 0.0
    %1636 = vmatprep.subr.mxu0 0.0
    %1637 = vmatpush1.msra.mxu0 0.0
    %1638 = vmatprep.subr.mxu0 0.0
    %1639 = vmatpush1.msra.mxu0 0.0
    %1640 = vmatprep.subr.mxu0 0.0
    %1641 = vmatpush1.msra.mxu0 0.0
    %1642 = vmatprep.subr.mxu0 0.0
    %1643 = vmatpush1.msra.mxu0 0.0
    %1644 = vmatprep.subr.mxu0 0.0
    %1645 = vmatpush1.msra.mxu0 0.0
    %1646 = vmatprep.subr.mxu0 0.0
    %1647 = vmatpush1.msra.mxu0 0.0
    %1648 = vmatprep.subr.mxu0 0.0
    %1649 = vmatpush1.msra.mxu0 0.0
    %1650 = vmatprep.subr.mxu0 0.0
    %1651 = vmatpush1.msra.mxu0 0.0
    %1652 = vmatprep.subr.mxu0 0.0
    %1653 = vmatpush1.msra.mxu0 0.0
    %1654 = vmatprep.subr.mxu0 0.0
    %1655 = vmatpush1.msra.mxu0 0.0
    %1656 = vmatprep.subr.mxu0 0.0
    %1657 = vmatpush1.msra.mxu0 0.0
    %1658 = vmatprep.subr.mxu0 0.0
    %1659 = vmatpush1.msra.mxu0 0.0
    %1660 = vmatprep.subr.mxu0 0.0
    %1661 = vmatpush1.msra.mxu0 %v1629
    %1662 = vmatprep.subr.mxu0 0.0
    %1663 = vmatpush1.msra.mxu0 %v1624
    %1664 = vmatprep.subr.mxu0 0.0
    %1665 = vmatpush2.msra.mxu0 0.0
    %1666 = vmatprep.subr.mxu0 0.0
    %1667 = vmatpush2.msra.mxu0 0.0
    %1668 = vmatprep.subr.mxu0 0.0
    %1669 = vmatpush2.msra.mxu0 0.0
    %1670 = vmatprep.subr.mxu0 0.0
    %1671 = vmatpush2.msra.mxu0 0.0
    %1672 = vmatprep.subr.mxu0 0.0
    %1673 = vmatpush2.msra.mxu0 0.0
    %1674 = vmatprep.subr.mxu0 0.0
    %1675 = vmatpush2.msra.mxu0 0.0
    %1676 = vmatprep.subr.mxu0 0.0
    %1677 = vmatpush2.msra.mxu0 0.0
    %1678 = vmatprep.subr.mxu0 0.0
    %1679 = vmatpush2.msra.mxu0 0.0
    %1680 = vmatprep.subr.mxu0 0.0
    %1681 = vmatpush2.msra.mxu0 0.0
    %1682 = vmatprep.subr.mxu0 0.0
    %1683 = vmatpush2.msra.mxu0 0.0
    %1684 = vmatprep.subr.mxu0 0.0
    %1685 = vmatpush2.msra.mxu0 0.0
    %1686 = vmatprep.subr.mxu0 0.0
    %1687 = vmatpush2.msra.mxu0 0.0
    %1688 = vmatprep.subr.mxu0 0.0
    %1689 = vmatpush2.msra.mxu0 0.0
    %1690 = vmatprep.subr.mxu0 0.0
    %1691 = vmatpush2.msra.mxu0 0.0
    %1692 = vmatprep.subr.mxu0 0.0
    %1693 = vmatpush2.msra.mxu0 0.0
    %1694 = vmatprep.subr.mxu0 0.0
    %1695 = vmatpush2.msra.mxu0 0.0
    %1696 = vmatprep.mubr.f32.mxu0 0.0
    %1697 = vmatmul.mubr.f32.gmra.mxu0 %v663
    %v1698 = vpop.f32.mrf.mxu0
    %v1699 = vadd.f32 0.0, %v1698
    %v1700 = vpop.f32.mrf.mxu0
    %1701 = vmatprep.mubr.f32.mxu0 0.0
    %1702 = vmatmul.mubr.f32.gmra.mxu0 %v666
    %v1703 = vpop.f32.mrf.mxu0
    %v1704 = vadd.f32 0.0, %v1703
    %v1705 = vpop.f32.mrf.mxu0
    %1706 = vmatprep.mubr.f32.mxu0 0.0
    %1707 = vmatmul.mubr.f32.gmra.mxu0 %v669
    %v1708 = vpop.f32.mrf.mxu0
    %v1709 = vadd.f32 0.0, %v1708
    %v1710 = vpop.f32.mrf.mxu0
    %1711 = vmatprep.mubr.f32.mxu0 0.0
    %1712 = vmatmul.mubr.f32.gmra.mxu0 %v672
    %v1713 = vpop.f32.mrf.mxu0
    %v1714 = vadd.f32 0.0, %v1713
    %v1715 = vpop.f32.mrf.mxu0
    %1716 = vdwg.mxu0
    %s1717 = scalar_lea.vmem [#allocation5], 96
    %1718 = vst.msk [vmem:[%s1717] sm:$0xff] %vm245, %v1699
    %1719 = vst.msk [vmem:[%s1717 + $0x8] sm:$0xff] %vm245, %v1704
    %1720 = vst.msk [vmem:[%s1717 + $0x10] sm:$0xff] %vm245, %v1709
    %1721 = vst.msk [vmem:[%s1717 + $0x18] sm:$0xff] %vm245, %v1714
    // Predicated region
    $region26: #{unet_dsv2.1} parent=1 // pred_check
      _
    $region27: #{unet_dsv2.1} parent=1 // pred_check_branch
      %1723 = sbr.rel (0) target = $region29
    $region28: #{unet_dsv2.1} parent=1 // pred_region
      %s1725 = ssub.s32 2048, 2048
      %1726 = vsyncadd [#allocation4], %s1725
      %s1727 = sshll.u32 [#allocation5], 4
      %s1728 = int_to_ptr.vmem [resolvable:$true] %s1727
      %1733 = dma.vmem_to_hbm [thread:$0]  %s1728, 2048, %s5, [#allocation4], 128, 128, 8
    $region29: #{unet_dsv2.1} parent=1 // pred_fallthru
      _
    // Predicated region
    $region30: #{unet_dsv2.1} parent=1 // pred_check
      _
    $region31: #{unet_dsv2.1} parent=1 // pred_check_branch
      %1735 = sbr.rel (0) target = $region33
    $region32: #{unet_dsv2.1} parent=1 // pred_region
      %1736 = dma.done [#allocation4], 2048
    $region33: #{unet_dsv2.1} parent=1 // pred_fallthru
      _
    %1737 = vsyncpa [#allocation3], 1
    %1738 = vsyncpa [#allocation4], 1

</llo_original>
